<compile_context>
chip_gen: v6e
topology: v6e:2x2x1
jax: 0.10.0
libtpu: 0.0.40
codegen_flags: <defaults>
</compile_context>

<pallas_src>
import functools
import math

import jax
import jax.numpy as jnp
import numpy as np
from jax.experimental import pallas as pl
from jax.experimental.pallas import tpu as pltpu

CONNECTIONS = {10: [9], 9: [8, 10], 8: [7, 9], 14: [15, 8], 15: [16, 14],
               11: [12, 8], 12: [13, 11], 7: [0, 8], 0: [1, 7], 1: [2, 0],
               2: [3, 1], 4: [5, 0], 5: [6, 4], 16: [15], 13: [12],
               3: [2], 6: [5]}

BN_EPS = 1e-5


# ---------------------------------------------------------------------------
# Kernel 1: fused U/V linear + graph aggregation + per-tile BN partial sums
# ---------------------------------------------------------------------------
def _gcn_phase1_kernel(x_ref, w_ref, b_ref, adjb_ref, sel_ref, y_ref, stats_ref,
                       *, n_sub, rows_g):
    # x_ref:     [1, n_sub*rows_g, Cin]   row-stacked samples (row = n*J + j)
    # w_ref:     [Cin, 2*Cout]            fused (V | U) weight  (no kron, no inflation)
    # b_ref:     [1, 2*Cout]              fused (V | U) bias row
    # adjb_ref:  [rows_g, rows_g]         kron(I_ga, A_norm) block-diag adjacency
    # sel_ref:   [J, rows_g]              per-joint row selector (tiled identity)
    # y_ref:     [1, n_sub*rows_g, Cout]  bf16 staging buffer (pre-BN activations)
    # stats_ref: [1, J, 2]                per-tile per-joint (sum, sumsq), f32 pre-cast
    w = w_ref[...]
    b = b_ref[...]
    adjb = adjb_ref[...]
    sel = sel_ref[...]
    cout = y_ref.shape[-1]
    nj = sel.shape[0]

    acc_s = jnp.zeros((nj, cout), jnp.float32)
    acc_ss = jnp.zeros((nj, cout), jnp.float32)

    # Static unroll over micro-groups; n_sub is capped at 8 so vreg pressure stays
    # bounded (for much larger tiles switch to lax.fori_loop(..., unroll=2)).
    for g in range(n_sub):
        lo = g * rows_g
        hi = lo + rows_g
        xg = x_ref[0, lo:hi, :]                                          # [rows_g, Cin]
        h = jnp.dot(xg, w, preferred_element_type=jnp.float32) + b       # [rows_g, 2*Cout]
        vx = h[:, :cout]                                                 # V(x)
        ux = h[:, cout:]                                                 # U(x)
        yg = jnp.dot(adjb, vx, preferred_element_type=jnp.float32) + ux  # [rows_g, Cout]
        # bf16 staging store (rows_g = 8*17 = 136 is even -> bf16 row-pair aligned).
        y_ref[0, lo:hi, :] = yg.astype(y_ref.dtype)
        # BN partials in f32, BEFORE the bf16 cast.
        acc_s = acc_s + jnp.dot(sel, yg, preferred_element_type=jnp.float32)
        acc_ss = acc_ss + jnp.dot(sel, yg * yg, preferred_element_type=jnp.float32)

    stats_ref[0] = jnp.concatenate(
        [jnp.sum(acc_s, axis=1, keepdims=True),
         jnp.sum(acc_ss, axis=1, keepdims=True)], axis=1)                # [J, 2]


# ---------------------------------------------------------------------------
# Kernel 2: BN affine (folded into per-row scale/shift) + residual + ReLU
# ---------------------------------------------------------------------------
def _gcn_phase2_kernel(x_ref, y_ref, scale_ref, shift_ref, o_ref):
    # Pure streaming elementwise pass; y is upcast from the bf16 staging buffer.
    o_ref[...] = jnp.maximum(
        x_ref[...] + y_ref[...].astype(jnp.float32) * scale_ref[...] + shift_ref[...],
        0.0)


def _choose_tiling(n):
    """Return (ga, n_sub): samples per grid step = ga * n_sub.

    ga is the aggregation micro-group (block-diag adjacency is [ga*J, ga*J], so it
    stays small); n_sub micro-groups are looped in-kernel to amortize the
    ~0.35us/step grid overhead while keeping num_tiles >= 2 whenever possible so
    the "parallel" axis can split across both v7x TensorCores.
    """
    if n % 8 == 0:                       # row blocks must be a multiple of 8 sublanes
        ga = 8
        n_sub = 1
        for s in range(1, 9):            # up to 64 samples per grid step
            t = ga * s
            if n % t == 0 and n // t >= 2:
                n_sub = s
        return ga, n_sub
    # TODO(synk): pad N to a multiple of 8 instead of this whole-batch fallback
    # (kron(I_N, A_norm) is O(N^2) memory, only acceptable for small N).
    return n, 1


@jax.jit
def gcn_forward_pallas(x, adj, uw, ub, vw, vb, gamma, beta):
    """x: [B, T, J, Cin] -> [B, T, J, Cout] (spatial mode, training-mode BN)."""
    B, T, J, Cin = x.shape
    Cout = uw.shape[0]
    # TODO(synk): dim_in != dim_out branch (no residual) not implemented.
    assert Cin == Cout, "residual path requires dim_in == dim_out"
    N = B * T

    ga, n_sub = _choose_tiling(N)
    tile_n = ga * n_sub                    # samples per grid step
    rows_g = ga * J                        # rows per aggregation micro-group
    tile_rows = tile_n * J                 # rows per grid step
    num_tiles = N // tile_n

    # ---- host-side prep: free reshapes + tiny one-off constants --------------
    # Row-stacked view (row = n*J + j): contiguous reshape, NO transpose pass.
    x3 = x.astype(jnp.float32).reshape(num_tiles, tile_rows, Cin)

    # Fused (V | U) weight / bias: one [Cin, 2*Cout] matmul, zero FLOP inflation.
    wf = jnp.concatenate([vw.T, uw.T], axis=1).astype(jnp.float32)       # [Cin, 2*Cout]
    bf_row = jnp.concatenate([vb, ub]).astype(jnp.float32)[None, :]      # [1, 2*Cout]

    # normalize_digraph hoisted out of the kernel: D^-1/2 A D^-1/2.
    # (Every joint of this skeleton has degree >= 1; zero degree would give inf.)
    deg = jnp.sum(adj, axis=-1)
    dinv = deg ** -0.5
    norm_adj = (dinv[:, None] * adj * dinv[None, :]).astype(jnp.float32)

    # Small per-micro-group block-diag adjacency (74 KiB for ga=8) and a per-joint
    # row selector for the BN partial sums; both stay resident in VMEM.
    adj_blk = jnp.kron(jnp.eye(ga, dtype=jnp.float32), norm_adj)          # [rows_g, rows_g]
    sel = jnp.tile(jnp.eye(J, dtype=jnp.float32), (1, ga))                # [J, rows_g]

    # ---- phase 1: y = A_norm @ V(x) + U(x)  (bf16 staging) + BN partials -----
    k1 = functools.partial(_gcn_phase1_kernel, n_sub=n_sub, rows_g=rows_g)
    y3, stats = pl.pallas_call(
        k1,
        out_shape=(
            jax.ShapeDtypeStruct((num_tiles, tile_rows, Cout), jnp.bfloat16),
            jax.ShapeDtypeStruct((num_tiles, J, 2), jnp.float32),
        ),
        grid=(num_tiles,),
        in_specs=[
            pl.BlockSpec((1, tile_rows, Cin), lambda i: (i, 0, 0)),
            pl.BlockSpec((Cin, 2 * Cout), lambda i: (0, 0)),
            pl.BlockSpec((1, 2 * Cout), lambda i: (0, 0)),
            pl.BlockSpec((rows_g, rows_g), lambda i: (0, 0)),
            pl.BlockSpec((J, rows_g), lambda i: (0, 0)),
        ],
        out_specs=(
            pl.BlockSpec((1, tile_rows, Cout), lambda i: (i, 0, 0)),
            pl.BlockSpec((1, J, 2), lambda i: (i, 0, 0)),
        ),
        compiler_params=pltpu.CompilerParams(
            dimension_semantics=("parallel",)),
    )(x3, wf, bf_row, adj_blk, sel)

    # ---- tiny [J]-sized BN finalize (training-mode batch statistics) ---------
    tot = jnp.sum(stats, axis=0)                       # [J, 2]
    cnt = float(N * Cout)
    mean = tot[:, 0] / cnt
    # Single-pass E[y^2] - E[y]^2 in f32, clamped >= 0 to guard cancellation.
    var = jnp.maximum(tot[:, 1] / cnt - mean * mean, 0.0)
    scale = gamma.astype(jnp.float32) / jnp.sqrt(var + BN_EPS)
    shift = beta.astype(jnp.float32) - mean * scale
    # Per-row (row = n*J + j) scale/shift columns, identical for every tile.
    scale_col = jnp.tile(scale, tile_n)[None, :, None]    # [1, tile_rows, 1]
    shift_col = jnp.tile(shift, tile_n)[None, :, None]

    # ---- phase 2: BN affine + residual + ReLU (pure streaming pass) ----------
    out3 = pl.pallas_call(
        _gcn_phase2_kernel,
        out_shape=jax.ShapeDtypeStruct((num_tiles, tile_rows, Cout), jnp.float32),
        grid=(num_tiles,),
        in_specs=[
            pl.BlockSpec((1, tile_rows, Cin), lambda i: (i, 0, 0)),
            pl.BlockSpec((1, tile_rows, Cout), lambda i: (i, 0, 0)),
            pl.BlockSpec((1, tile_rows, 1), lambda i: (0, 0, 0)),
            pl.BlockSpec((1, tile_rows, 1), lambda i: (0, 0, 0)),
        ],
        out_specs=pl.BlockSpec((1, tile_rows, Cout), lambda i: (i, 0, 0)),
        compiler_params=pltpu.CompilerParams(
            dimension_semantics=("parallel",)),
    )(x3, y3, scale_col, shift_col)

    # Undo the (free) row-stacked reshape.
    return out3.reshape(B, T, J, Cout)


def gcn_forward_ref(x, adj, uw, ub, vw, vb, gamma, beta):
    """Pure-JAX reference replicating the PyTorch forward (spatial, training BN)."""
    B, T, J, Cin = x.shape
    Cout = uw.shape[0]
    xf = x.reshape(B * T, J, Cin)

    vx = jnp.einsum('njc,dc->njd', xf, vw) + vb
    ux = jnp.einsum('njc,dc->njd', xf, uw) + ub

    deg = adj.sum(-1)
    dinv = deg ** -0.5
    norm_adj = dinv[:, None] * adj * dinv[None, :]
    agg = jnp.einsum('ik,nkc->nic', norm_adj, vx)

    y = agg + ux
    mean = y.mean(axis=(0, 2), keepdims=True)
    var = jnp.mean((y - mean) ** 2, axis=(0, 2), keepdims=True)
    bn = (y - mean) / jnp.sqrt(var + BN_EPS) * gamma[None, :, None] + beta[None, :, None]
    out = jax.nn.relu(xf + bn)
    return out.reshape(B, T, J, Cout)


def build_spatial_adj(num_nodes):
    adj = np.zeros((num_nodes, num_nodes), dtype=np.float32)
    for i in range(num_nodes):
        for j in CONNECTIONS[i]:
            adj[i, j] = 1.0
    return jnp.asarray(adj)


if __name__ == "__main__":
    # Small shapes consistent with the module (3D pose: 17 joints).
    B, T, J = 2, 8, 17
    dim_in = dim_out = 32

    key = jax.random.PRNGKey(0)
    kx, kuw, kvw, kub, kvb = jax.random.split(key, 5)

    x = jax.random.normal(kx, (B, T, J, dim_in), dtype=jnp.float32)

    # Parameter init mirroring the module: weights ~ N(0, sqrt(2/dim_in)),
    # Linear biases keep PyTorch's default U(-1/sqrt(fan_in), 1/sqrt(fan_in)),
    # BN gamma=1, beta=0.
    std = math.sqrt(2.0 / dim_in)
    uw = std * jax.random.normal(kuw, (dim_out, dim_in), dtype=jnp.float32)
    vw = std * jax.random.normal(kvw, (dim_out, dim_in), dtype=jnp.float32)
    bound = 1.0 / math.sqrt(dim_in)
    ub = jax.random.uniform(kub, (dim_out,), minval=-bound, maxval=bound, dtype=jnp.float32)
    vb = jax.random.uniform(kvb, (dim_out,), minval=-bound, maxval=bound, dtype=jnp.float32)
    gamma = jnp.ones((J,), dtype=jnp.float32)
    beta = jnp.zeros((J,), dtype=jnp.float32)

    adj = build_spatial_adj(J)

    out = gcn_forward_pallas(x, adj, uw, ub, vw, vb, gamma, beta)
    out = jax.block_until_ready(out)

    ref = gcn_forward_ref(x, adj, uw, ub, vw, vb, gamma, beta)
    assert out.shape == (B, T, J, dim_out)
    # y is staged in bf16 between the two kernels (review item), so the output
    # tolerance is bf16-level; BN statistics themselves are exact f32 (pre-cast).
    np.testing.assert_allclose(np.asarray(out), np.asarray(ref), rtol=2e-2, atol=2e-2)

    print("KERNEL_OK")
</pallas_src>

<mosaic_0001>
module attributes {stable_mosaic.version = 11 : i64} {
  func.func @_gcn_phase1_kernel(%arg0: i32, %arg1: memref<1x136x32xf32, #tpu.memory_space<vmem>>, %arg2: memref<32x64xf32, #tpu.memory_space<vmem>>, %arg3: memref<1x64xf32, #tpu.memory_space<vmem>>, %arg4: memref<136x136xf32, #tpu.memory_space<vmem>>, %arg5: memref<17x136xf32, #tpu.memory_space<vmem>>, %arg6: memref<1x136x32xbf16, #tpu.memory_space<vmem>>, %arg7: memref<1x17x2xf32, #tpu.memory_space<vmem>>) attributes {dimension_semantics = [#tpu.dimension_semantics<parallel>], iteration_bounds = array<i64: 2>, scalar_prefetch = 0 : i64, scratch_operands = 0 : i64, tpu.core_type = #tpu.core_type<tc>, window_params = [{transform_indices = @transform_0, window_bounds = array<i64: 1, 136, 32>}, {pipeline_mode = #tpu.pipeline_mode<synchronous>, transform_indices = @transform_1, window_bounds = array<i64: 32, 64>}, {pipeline_mode = #tpu.pipeline_mode<synchronous>, transform_indices = @transform_2, window_bounds = array<i64: 1, 64>}, {pipeline_mode = #tpu.pipeline_mode<synchronous>, transform_indices = @transform_3, window_bounds = array<i64: 136, 136>}, {pipeline_mode = #tpu.pipeline_mode<synchronous>, transform_indices = @transform_4, window_bounds = array<i64: 17, 136>}, {transform_indices = @transform_5, window_bounds = array<i64: 1, 136, 32>}, {transform_indices = @transform_6, window_bounds = array<i64: 1, 17, 2>}]} {
    %c0 = arith.constant 0 : index
    %c0_0 = arith.constant 0 : index
    %0 = vector.load %arg2[%c0, %c0_0] : memref<32x64xf32, #tpu.memory_space<vmem>>, vector<32x64xf32>
    %c0_1 = arith.constant 0 : index
    %c0_2 = arith.constant 0 : index
    %1 = vector.load %arg3[%c0_1, %c0_2] : memref<1x64xf32, #tpu.memory_space<vmem>>, vector<1x64xf32>
    %c0_3 = arith.constant 0 : index
    %c0_4 = arith.constant 0 : index
    %2 = vector.load %arg4[%c0_3, %c0_4] : memref<136x136xf32, #tpu.memory_space<vmem>>, vector<136x136xf32>
    %c0_5 = arith.constant 0 : index
    %c0_6 = arith.constant 0 : index
    %3 = vector.load %arg5[%c0_5, %c0_6] : memref<17x136xf32, #tpu.memory_space<vmem>>, vector<17x136xf32>
    %cst = arith.constant 0.000000e+00 : f32
    %4 = vector.broadcast %cst : f32 to vector<17x32xf32>
    %cst_7 = arith.constant 0.000000e+00 : f32
    %5 = vector.broadcast %cst_7 : f32 to vector<17x32xf32>
    %c0_8 = arith.constant 0 : index
    %c0_9 = arith.constant 0 : index
    %c0_10 = arith.constant 0 : index
    %6 = vector.load %arg1[%c0_8, %c0_9, %c0_10] : memref<1x136x32xf32, #tpu.memory_space<vmem>>, vector<1x136x32xf32>
    %7 = vector.shape_cast %6 : vector<1x136x32xf32> to vector<136x32xf32>
    %cst_11 = arith.constant dense<0.000000e+00> : vector<136x64xf32>
    %8 = tpu.matmul %7, %0, %cst_11 {dimension_numbers = #tpu.dot_dimension_numbers<[1], [0], [0], [1], [0, 0, 1, 1], [], []>} : vector<136x32xf32>, vector<32x64xf32>, vector<136x64xf32> -> vector<136x64xf32>
    %9 = vector.broadcast %1 : vector<1x64xf32> to vector<136x64xf32>
    %10 = arith.addf %8, %9 : vector<136x64xf32>
    %11 = vector.extract_strided_slice %10 {offsets = [0, 0], sizes = [136, 32], strides = [1, 1]} : vector<136x64xf32> to vector<136x32xf32>
    %12 = vector.extract_strided_slice %10 {offsets = [0, 32], sizes = [136, 32], strides = [1, 1]} : vector<136x64xf32> to vector<136x32xf32>
    %cst_12 = arith.constant dense<0.000000e+00> : vector<136x32xf32>
    %13 = tpu.matmul %2, %11, %cst_12 {dimension_numbers = #tpu.dot_dimension_numbers<[1], [0], [0], [1], [0, 0, 1, 1], [], []>} : vector<136x136xf32>, vector<136x32xf32>, vector<136x32xf32> -> vector<136x32xf32>
    %14 = arith.addf %13, %12 : vector<136x32xf32>
    %15 = arith.truncf %14 : vector<136x32xf32> to vector<136x32xbf16>
    %c0_13 = arith.constant 0 : index
    %c0_14 = arith.constant 0 : index
    %c0_15 = arith.constant 0 : index
    %16 = vector.load %arg6[%c0_13, %c0_14, %c0_15] : memref<1x136x32xbf16, #tpu.memory_space<vmem>>, vector<1x136x32xbf16>
    %17 = vector.shape_cast %16 : vector<1x136x32xbf16> to vector<136x32xbf16>
    %18 = vector.shape_cast %15 : vector<136x32xbf16> to vector<1x136x32xbf16>
    tpu.vector_store %arg6[%c0_13, %c0_14, %c0_15], %18 {strides = array<i32>} : memref<1x136x32xbf16, #tpu.memory_space<vmem>>, vector<1x136x32xbf16>,
    %cst_16 = arith.constant dense<0.000000e+00> : vector<17x32xf32>
    %19 = tpu.matmul %3, %14, %cst_16 {dimension_numbers = #tpu.dot_dimension_numbers<[1], [0], [0], [1], [0, 0, 1, 1], [], []>} : vector<17x136xf32>, vector<136x32xf32>, vector<17x32xf32> -> vector<17x32xf32>
    %20 = arith.addf %4, %19 : vector<17x32xf32>
    %21 = arith.mulf %14, %14 : vector<136x32xf32>
    %cst_17 = arith.constant dense<0.000000e+00> : vector<17x32xf32>
    %22 = tpu.matmul %3, %21, %cst_17 {dimension_numbers = #tpu.dot_dimension_numbers<[1], [0], [0], [1], [0, 0, 1, 1], [], []>} : vector<17x136xf32>, vector<136x32xf32>, vector<17x32xf32> -> vector<17x32xf32>
    %23 = arith.addf %5, %22 : vector<17x32xf32>
    %cst_18 = arith.constant dense<0.000000e+00> : vector<17xf32>
    %24 = vector.multi_reduction <add>, %20, %cst_18 [1] : vector<17x32xf32> to vector<17xf32>
    %25 = vector.shape_cast %24 : vector<17xf32> to vector<17x1xf32>
    %cst_19 = arith.constant dense<0.000000e+00> : vector<17xf32>
    %26 = vector.multi_reduction <add>, %23, %cst_19 [1] : vector<17x32xf32> to vector<17xf32>
    %27 = vector.shape_cast %26 : vector<17xf32> to vector<17x1xf32>
    %28 = tpu.concatenate %25, %27 in 1 : vector<17x1xf32>, vector<17x1xf32> -> vector<17x2xf32>
    %c0_20 = arith.constant 0 : index
    %c0_21 = arith.constant 0 : index
    %c0_22 = arith.constant 0 : index
    %29 = vector.load %arg7[%c0_20, %c0_21, %c0_22] : memref<1x17x2xf32, #tpu.memory_space<vmem>>, vector<1x17x2xf32>
    %30 = vector.shape_cast %29 : vector<1x17x2xf32> to vector<17x2xf32>
    %31 = vector.shape_cast %28 : vector<17x2xf32> to vector<1x17x2xf32>
    tpu.vector_store %arg7[%c0_20, %c0_21, %c0_22], %31 {strides = array<i32>} : memref<1x17x2xf32, #tpu.memory_space<vmem>>, vector<1x17x2xf32>,
    return
  }
  func.func @transform_0(%arg0: i32) -> (i32, i32, i32) {
    %c0_i32 = arith.constant 0 : i32
    %c0_i32_0 = arith.constant 0 : i32
    %c0_i32_1 = arith.constant 0 : i32
    return %arg0, %c0_i32, %c0_i32_0 : i32, i32, i32
  }
  func.func @transform_1(%arg0: i32) -> (i32, i32) {
    %c0_i32 = arith.constant 0 : i32
    %c0_i32_0 = arith.constant 0 : i32
    %c0_i32_1 = arith.constant 0 : i32
    return %c0_i32, %c0_i32_0 : i32, i32
  }
  func.func @transform_2(%arg0: i32) -> (i32, i32) {
    %c0_i32 = arith.constant 0 : i32
    %c0_i32_0 = arith.constant 0 : i32
    %c0_i32_1 = arith.constant 0 : i32
    return %c0_i32, %c0_i32_0 : i32, i32
  }
  func.func @transform_3(%arg0: i32) -> (i32, i32) {
    %c0_i32 = arith.constant 0 : i32
    %c0_i32_0 = arith.constant 0 : i32
    %c0_i32_1 = arith.constant 0 : i32
    return %c0_i32, %c0_i32_0 : i32, i32
  }
  func.func @transform_4(%arg0: i32) -> (i32, i32) {
    %c0_i32 = arith.constant 0 : i32
    %c0_i32_0 = arith.constant 0 : i32
    %c0_i32_1 = arith.constant 0 : i32
    return %c0_i32, %c0_i32_0 : i32, i32
  }
  func.func @transform_5(%arg0: i32) -> (i32, i32, i32) {
    %c0_i32 = arith.constant 0 : i32
    %c0_i32_0 = arith.constant 0 : i32
    %c0_i32_1 = arith.constant 0 : i32
    return %arg0, %c0_i32, %c0_i32_0 : i32, i32, i32
  }
  func.func @transform_6(%arg0: i32) -> (i32, i32, i32) {
    %c0_i32 = arith.constant 0 : i32
    %c0_i32_0 = arith.constant 0 : i32
    %c0_i32_1 = arith.constant 0 : i32
    return %arg0, %c0_i32, %c0_i32_0 : i32, i32, i32
  }
}

module attributes {stable_mosaic.version = 11 : i64} {
  func.func @_gcn_phase2_kernel(%arg0: i32, %arg1: memref<1x136x32xf32, #tpu.memory_space<vmem>>, %arg2: memref<1x136x32xbf16, #tpu.memory_space<vmem>>, %arg3: memref<1x136x1xf32, #tpu.memory_space<vmem>>, %arg4: memref<1x136x1xf32, #tpu.memory_space<vmem>>, %arg5: memref<1x136x32xf32, #tpu.memory_space<vmem>>) attributes {dimension_semantics = [#tpu.dimension_semantics<parallel>], iteration_bounds = array<i64: 2>, scalar_prefetch = 0 : i64, scratch_operands = 0 : i64, tpu.core_type = #tpu.core_type<tc>, window_params = [{transform_indices = @transform_0, window_bounds = array<i64: 1, 136, 32>}, {transform_indices = @transform_1, window_bounds = array<i64: 1, 136, 32>}, {pipeline_mode = #tpu.pipeline_mode<synchronous>, transform_indices = @transform_2, window_bounds = array<i64: 1, 136, 1>}, {pipeline_mode = #tpu.pipeline_mode<synchronous>, transform_indices = @transform_3, window_bounds = array<i64: 1, 136, 1>}, {transform_indices = @transform_4, window_bounds = array<i64: 1, 136, 32>}]} {
    %c0 = arith.constant 0 : index
    %c0_0 = arith.constant 0 : index
    %c0_1 = arith.constant 0 : index
    %0 = vector.load %arg1[%c0, %c0_0, %c0_1] : memref<1x136x32xf32, #tpu.memory_space<vmem>>, vector<1x136x32xf32>
    %c0_2 = arith.constant 0 : index
    %c0_3 = arith.constant 0 : index
    %c0_4 = arith.constant 0 : index
    %1 = vector.load %arg2[%c0_2, %c0_3, %c0_4] : memref<1x136x32xbf16, #tpu.memory_space<vmem>>, vector<1x136x32xbf16>
    %2 = arith.extf %1 : vector<1x136x32xbf16> to vector<1x136x32xf32>
    %c0_5 = arith.constant 0 : index
    %c0_6 = arith.constant 0 : index
    %c0_7 = arith.constant 0 : index
    %3 = vector.load %arg3[%c0_5, %c0_6, %c0_7] : memref<1x136x1xf32, #tpu.memory_space<vmem>>, vector<1x136x1xf32>
    %4 = vector.broadcast %3 : vector<1x136x1xf32> to vector<1x136x32xf32>
    %5 = arith.mulf %2, %4 : vector<1x136x32xf32>
    %6 = arith.addf %0, %5 : vector<1x136x32xf32>
    %c0_8 = arith.constant 0 : index
    %c0_9 = arith.constant 0 : index
    %c0_10 = arith.constant 0 : index
    %7 = vector.load %arg4[%c0_8, %c0_9, %c0_10] : memref<1x136x1xf32, #tpu.memory_space<vmem>>, vector<1x136x1xf32>
    %8 = vector.broadcast %7 : vector<1x136x1xf32> to vector<1x136x32xf32>
    %9 = arith.addf %6, %8 : vector<1x136x32xf32>
    %cst = arith.constant 0.000000e+00 : f32
    %10 = vector.broadcast %cst : f32 to vector<1x136x32xf32>
    %11 = arith.maximumf %9, %10 : vector<1x136x32xf32>
    %c0_11 = arith.constant 0 : index
    %c0_12 = arith.constant 0 : index
    %c0_13 = arith.constant 0 : index
    %12 = vector.load %arg5[%c0_11, %c0_12, %c0_13] : memref<1x136x32xf32, #tpu.memory_space<vmem>>, vector<1x136x32xf32>
    tpu.vector_store %arg5[%c0_11, %c0_12, %c0_13], %11 {strides = array<i32>} : memref<1x136x32xf32, #tpu.memory_space<vmem>>, vector<1x136x32xf32>,
    return
  }
  func.func @transform_0(%arg0: i32) -> (i32, i32, i32) {
    %c0_i32 = arith.constant 0 : i32
    %c0_i32_0 = arith.constant 0 : i32
    %c0_i32_1 = arith.constant 0 : i32
    return %arg0, %c0_i32, %c0_i32_0 : i32, i32, i32
  }
  func.func @transform_1(%arg0: i32) -> (i32, i32, i32) {
    %c0_i32 = arith.constant 0 : i32
    %c0_i32_0 = arith.constant 0 : i32
    %c0_i32_1 = arith.constant 0 : i32
    return %arg0, %c0_i32, %c0_i32_0 : i32, i32, i32
  }
  func.func @transform_2(%arg0: i32) -> (i32, i32, i32) {
    %c0_i32 = arith.constant 0 : i32
    %c0_i32_0 = arith.constant 0 : i32
    %c0_i32_1 = arith.constant 0 : i32
    %c0_i32_2 = arith.constant 0 : i32
    return %c0_i32, %c0_i32_0, %c0_i32_1 : i32, i32, i32
  }
  func.func @transform_3(%arg0: i32) -> (i32, i32, i32) {
    %c0_i32 = arith.constant 0 : i32
    %c0_i32_0 = arith.constant 0 : i32
    %c0_i32_1 = arith.constant 0 : i32
    %c0_i32_2 = arith.constant 0 : i32
    return %c0_i32, %c0_i32_0, %c0_i32_1 : i32, i32, i32
  }
  func.func @transform_4(%arg0: i32) -> (i32, i32, i32) {
    %c0_i32 = arith.constant 0 : i32
    %c0_i32_0 = arith.constant 0 : i32
    %c0_i32_1 = arith.constant 0 : i32
    return %arg0, %c0_i32, %c0_i32_0 : i32, i32, i32
  }
}

</mosaic_0001>

<llo_original>
// kernel: tile.19
$region0: #{tile.19}
  %s0 = inlined_call_operand.vmem [shape: f32[17,8,17], index: 0, kind: input, shape index: {}]
  %s1 = inlined_call_operand.vmem [shape: f32[17,136], index: 1, kind: output, shape index: {}]
  %v2 = vld [vmem:[%s0] ss:$8 sm:$0xf]
  %v3 = vld [vmem:[%s0] ss:$8 sm:$0xf0]
  %vm4 = vcmask 1047556
  %v5 = vsel %vm4, %v3, %v2
  %vm6 = vcmask 138240
  %7 = vst.msk [vmem:[%s1] sm:$0xff] %vm6, %v5
  %s8 = scalar_lea.vmem %s0, 64
  %v9 = vld [vmem:[%s8] ss:$8 sm:$0xf]
  %s10 = scalar_lea.vmem %s0, 64
  %v11 = vld [vmem:[%s10] ss:$8 sm:$0xf0]
  %vm12 = vcmask 1047556
  %v13 = vsel %vm12, %v11, %v9
  %vm14 = vcmask 138240
  %s15 = scalar_lea.vmem %s1, 16
  %16 = vst.msk [vmem:[%s15] sm:$0xff] %vm14, %v13
  %s17 = scalar_lea.vmem %s0, 128
  %v18 = vld [vmem:[%s17] sm:$0x1]
  %vm19 = vcmask 138240
  %s20 = scalar_lea.vmem %s1, 32
  %21 = vst.msk [vmem:[%s20] sm:$0x1] %vm19, %v18
  %s22 = scalar_lea.vmem %s0, 7
  %v23 = vld [vmem:[%s22] ss:$8 sm:$0xf]
  %s24 = scalar_lea.vmem %s0, 7
  %v25 = vld [vmem:[%s24] ss:$8 sm:$0xf0]
  %vm26 = vcmask 1047556
  %v27 = vsel %vm26, %v25, %v23
  %s28 = scalar_lea.vmem %s0, 7
  %v29 = vld [vmem:[%s28] ss:$8 sm:$0xf]
  %s30 = scalar_lea.vmem %s0, 7
  %v31 = vld [vmem:[%s30] ss:$8 sm:$0xf0]
  %vm32 = vcmask 1047556
  %v33 = vsel %vm32, %v31, %v29
  %vm34 = vcmask 72704
  %v35 = vsel %vm34, %v33, %v27
  %36 = vrot.lane.b32.xlu0 %v35, 119
  %v37 = vpop.permute.xlu0 %36
  %vm38 = vcmask 64512
  %s39 = scalar_lea.vmem %s1, 8
  %40 = vst.msk [vmem:[%s39] sm:$0xff] %vm38, %v37
  %vm41 = vcmask 1048504
  %42 = vst.msk [vmem:[%s1] sm:$0xff] %vm41, %v37
  %s43 = scalar_lea.vmem %s0, 135
  %v44 = vld [vmem:[%s43] sm:$0x1]
  %s45 = scalar_lea.vmem %s0, 63
  %v46 = vld [vmem:[%s45] ss:$8 sm:$0x1e]
  %vm47 = vcmask 1044481
  %v48 = vsel %vm47, %v46, %v44
  %s49 = scalar_lea.vmem %s0, 63
  %v50 = vld [vmem:[%s49] ss:$8 sm:$0xe0]
  %vm51 = vcmask 1047557
  %v52 = vsel %vm51, %v50, %v48
  %s53 = scalar_lea.vmem %s0, 135
  %v54 = vld [vmem:[%s53] sm:$0x1]
  %s55 = scalar_lea.vmem %s0, 63
  %v56 = vld [vmem:[%s55] ss:$8 sm:$0x1e]
  %vm57 = vcmask 1044481
  %v58 = vsel %vm57, %v56, %v54
  %s59 = scalar_lea.vmem %s0, 63
  %v60 = vld [vmem:[%s59] ss:$8 sm:$0xe0]
  %vm61 = vcmask 1047557
  %v62 = vsel %vm61, %v60, %v58
  %vm63 = vcmask 72704
  %v64 = vsel %vm63, %v62, %v52
  %65 = vrot.lane.b32.xlu0 %v64, 119
  %v66 = vpop.permute.xlu0 %65
  %vm67 = vcmask 64512
  %s68 = scalar_lea.vmem %s1, 40
  %69 = vst.msk [vmem:[%s68] ss:$-16 sm:$0x3] %vm67, %v66
  %s70 = scalar_lea.vmem %s1, 23
  %71 = vst.msk [vmem:[%s70] sm:$0xfc] %vm67, %v66
  %vm72 = vcmask 1048504
  %s73 = scalar_lea.vmem %s1, 32
  %74 = vst.msk [vmem:[%s73] ss:$-16 sm:$0x3] %vm72, %v66
  %s75 = scalar_lea.vmem %s1, 15
  %76 = vst.msk [vmem:[%s75] sm:$0xfc] %vm72, %v66
  %s77 = scalar_lea.vmem %s0, 127
  %v78 = vld [vmem:[%s77] sm:$0x1]
  %s79 = scalar_lea.vmem %s0, 127
  %v80 = vld [vmem:[%s79] sm:$0x1]
  %vm81 = vcmask 72704
  %v82 = vsel %vm81, %v80, %v78
  %83 = vrot.lane.b32.xlu0 %v82, 119
  %v84 = vpop.permute.xlu0 %83
  %vm85 = vcmask 64512
  %s86 = scalar_lea.vmem %s1, 31
  %87 = vst.msk [vmem:[%s86] sm:$0x1] %vm85, %v84
  %vm88 = vcmask 1048504
  %s89 = scalar_lea.vmem %s1, 23
  %90 = vst.msk [vmem:[%s89] sm:$0x1] %vm88, %v84
  %s91 = scalar_lea.vmem %s0, 6
  %v92 = vld [vmem:[%s91] ss:$8 sm:$0xf]
  %s93 = scalar_lea.vmem %s0, 6
  %v94 = vld [vmem:[%s93] ss:$8 sm:$0xf0]
  %vm95 = vcmask 1047556
  %v96 = vsel %vm95, %v94, %v92
  %97 = vrot.lane.b32.xlu0 %v96, 102
  %v98 = vpop.permute.xlu0 %97
  %vm99 = vcmask 974640
  %100 = vst.msk [vmem:[%s1] sm:$0xff] %vm99, %v98
  %s101 = scalar_lea.vmem %s0, 134
  %v102 = vld [vmem:[%s101] sm:$0x1]
  %s103 = scalar_lea.vmem %s0, 62
  %v104 = vld [vmem:[%s103] ss:$8 sm:$0x1e]
  %vm105 = vcmask 1044481
  %v106 = vsel %vm105, %v104, %v102
  %s107 = scalar_lea.vmem %s0, 62
  %v108 = vld [vmem:[%s107] ss:$8 sm:$0xe0]
  %vm109 = vcmask 1047557
  %v110 = vsel %vm109, %v108, %v106
  %111 = vrot.lane.b32.xlu0 %v110, 102
  %v112 = vpop.permute.xlu0 %111
  %vm113 = vcmask 974640
  %s114 = scalar_lea.vmem %s1, 32
  %115 = vst.msk [vmem:[%s114] ss:$-16 sm:$0x3] %vm113, %v112
  %s116 = scalar_lea.vmem %s1, 15
  %117 = vst.msk [vmem:[%s116] sm:$0xfc] %vm113, %v112
  %s118 = scalar_lea.vmem %s0, 126
  %v119 = vld [vmem:[%s118] sm:$0x1]
  %120 = vrot.lane.b32.xlu0 %v119, 102
  %v121 = vpop.permute.xlu0 %120
  %vm122 = vcmask 974640
  %s123 = scalar_lea.vmem %s1, 23
  %124 = vst.msk [vmem:[%s123] sm:$0x1] %vm122, %v121
  %s125 = scalar_lea.vmem %s0, 5
  %v126 = vld [vmem:[%s125] ss:$8 sm:$0xf]
  %s127 = scalar_lea.vmem %s0, 5
  %v128 = vld [vmem:[%s127] ss:$8 sm:$0xf0]
  %vm129 = vcmask 1047556
  %v130 = vsel %vm129, %v128, %v126
  %131 = vrot.lane.b32.xlu0 %v130, 85
  %v132 = vpop.permute.xlu0 %131
  %vm133 = vcmask 835240
  %134 = vst.msk [vmem:[%s1] sm:$0xff] %vm133, %v132
  %s135 = scalar_lea.vmem %s0, 133
  %v136 = vld [vmem:[%s135] sm:$0x1]
  %s137 = scalar_lea.vmem %s0, 61
  %v138 = vld [vmem:[%s137] ss:$8 sm:$0x1e]
  %vm139 = vcmask 1044481
  %v140 = vsel %vm139, %v138, %v136
  %s141 = scalar_lea.vmem %s0, 61
  %v142 = vld [vmem:[%s141] ss:$8 sm:$0xe0]
  %vm143 = vcmask 1047557
  %v144 = vsel %vm143, %v142, %v140
  %145 = vrot.lane.b32.xlu0 %v144, 85
  %v146 = vpop.permute.xlu0 %145
  %vm147 = vcmask 835240
  %s148 = scalar_lea.vmem %s1, 32
  %149 = vst.msk [vmem:[%s148] ss:$-16 sm:$0x3] %vm147, %v146
  %s150 = scalar_lea.vmem %s1, 15
  %151 = vst.msk [vmem:[%s150] sm:$0xfc] %vm147, %v146
  %s152 = scalar_lea.vmem %s0, 125
  %v153 = vld [vmem:[%s152] sm:$0x1]
  %154 = vrot.lane.b32.xlu0 %v153, 85
  %v155 = vpop.permute.xlu0 %154
  %vm156 = vcmask 835240
  %s157 = scalar_lea.vmem %s1, 23
  %158 = vst.msk [vmem:[%s157] sm:$0x1] %vm156, %v155
  %s159 = scalar_lea.vmem %s0, 4
  %v160 = vld [vmem:[%s159] ss:$8 sm:$0xf]
  %s161 = scalar_lea.vmem %s0, 4
  %v162 = vld [vmem:[%s161] ss:$8 sm:$0xf0]
  %vm163 = vcmask 1047556
  %v164 = vsel %vm163, %v162, %v160
  %165 = vrot.lane.b32.xlu0 %v164, 68
  %v166 = vpop.permute.xlu0 %165
  %vm167 = vcmask 695840
  %168 = vst.msk [vmem:[%s1] sm:$0xff] %vm167, %v166
  %s169 = scalar_lea.vmem %s0, 132
  %v170 = vld [vmem:[%s169] sm:$0x1]
  %s171 = scalar_lea.vmem %s0, 60
  %v172 = vld [vmem:[%s171] ss:$8 sm:$0x1e]
  %vm173 = vcmask 1044481
  %v174 = vsel %vm173, %v172, %v170
  %s175 = scalar_lea.vmem %s0, 60
  %v176 = vld [vmem:[%s175] ss:$8 sm:$0xe0]
  %vm177 = vcmask 1047557
  %v178 = vsel %vm177, %v176, %v174
  %179 = vrot.lane.b32.xlu0 %v178, 68
  %v180 = vpop.permute.xlu0 %179
  %vm181 = vcmask 695840
  %s182 = scalar_lea.vmem %s1, 32
  %183 = vst.msk [vmem:[%s182] ss:$-16 sm:$0x3] %vm181, %v180
  %s184 = scalar_lea.vmem %s1, 15
  %185 = vst.msk [vmem:[%s184] sm:$0xfc] %vm181, %v180
  %s186 = scalar_lea.vmem %s0, 124
  %v187 = vld [vmem:[%s186] sm:$0x1]
  %188 = vrot.lane.b32.xlu0 %v187, 68
  %v189 = vpop.permute.xlu0 %188
  %vm190 = vcmask 695840
  %s191 = scalar_lea.vmem %s1, 23
  %192 = vst.msk [vmem:[%s191] sm:$0x1] %vm190, %v189
  %s193 = scalar_lea.vmem %s0, 3
  %v194 = vld [vmem:[%s193] ss:$8 sm:$0xf]
  %s195 = scalar_lea.vmem %s0, 3
  %v196 = vld [vmem:[%s195] ss:$8 sm:$0xf0]
  %vm197 = vcmask 1047556
  %v198 = vsel %vm197, %v196, %v194
  %199 = vrot.lane.b32.xlu0 %v198, 51
  %v200 = vpop.permute.xlu0 %199
  %vm201 = vcmask 556440
  %202 = vst.msk [vmem:[%s1] sm:$0xff] %vm201, %v200
  %s203 = scalar_lea.vmem %s0, 131
  %v204 = vld [vmem:[%s203] sm:$0x1]
  %s205 = scalar_lea.vmem %s0, 59
  %v206 = vld [vmem:[%s205] ss:$8 sm:$0x1e]
  %vm207 = vcmask 1044481
  %v208 = vsel %vm207, %v206, %v204
  %s209 = scalar_lea.vmem %s0, 59
  %v210 = vld [vmem:[%s209] ss:$8 sm:$0xe0]
  %vm211 = vcmask 1047557
  %v212 = vsel %vm211, %v210, %v208
  %213 = vrot.lane.b32.xlu0 %v212, 51
  %v214 = vpop.permute.xlu0 %213
  %vm215 = vcmask 556440
  %s216 = scalar_lea.vmem %s1, 32
  %217 = vst.msk [vmem:[%s216] ss:$-16 sm:$0x3] %vm215, %v214
  %s218 = scalar_lea.vmem %s1, 15
  %219 = vst.msk [vmem:[%s218] sm:$0xfc] %vm215, %v214
  %s220 = scalar_lea.vmem %s0, 123
  %v221 = vld [vmem:[%s220] sm:$0x1]
  %222 = vrot.lane.b32.xlu0 %v221, 51
  %v223 = vpop.permute.xlu0 %222
  %vm224 = vcmask 556440
  %s225 = scalar_lea.vmem %s1, 23
  %226 = vst.msk [vmem:[%s225] sm:$0x1] %vm224, %v223
  %s227 = scalar_lea.vmem %s0, 2
  %v228 = vld [vmem:[%s227] ss:$8 sm:$0xf]
  %s229 = scalar_lea.vmem %s0, 2
  %v230 = vld [vmem:[%s229] ss:$8 sm:$0xf0]
  %vm231 = vcmask 1047556
  %v232 = vsel %vm231, %v230, %v228
  %233 = vrot.lane.b32.xlu0 %v232, 34
  %v234 = vpop.permute.xlu0 %233
  %vm235 = vcmask 417040
  %236 = vst.msk [vmem:[%s1] sm:$0xff] %vm235, %v234
  %s237 = scalar_lea.vmem %s0, 130
  %v238 = vld [vmem:[%s237] sm:$0x1]
  %s239 = scalar_lea.vmem %s0, 58
  %v240 = vld [vmem:[%s239] ss:$8 sm:$0x1e]
  %vm241 = vcmask 1044481
  %v242 = vsel %vm241, %v240, %v238
  %s243 = scalar_lea.vmem %s0, 58
  %v244 = vld [vmem:[%s243] ss:$8 sm:$0xe0]
  %vm245 = vcmask 1047557
  %v246 = vsel %vm245, %v244, %v242
  %247 = vrot.lane.b32.xlu0 %v246, 34
  %v248 = vpop.permute.xlu0 %247
  %vm249 = vcmask 417040
  %s250 = scalar_lea.vmem %s1, 32
  %251 = vst.msk [vmem:[%s250] ss:$-16 sm:$0x3] %vm249, %v248
  %s252 = scalar_lea.vmem %s1, 15
  %253 = vst.msk [vmem:[%s252] sm:$0xfc] %vm249, %v248
  %s254 = scalar_lea.vmem %s0, 122
  %v255 = vld [vmem:[%s254] sm:$0x1]
  %256 = vrot.lane.b32.xlu0 %v255, 34
  %v257 = vpop.permute.xlu0 %256
  %vm258 = vcmask 417040
  %s259 = scalar_lea.vmem %s1, 23
  %260 = vst.msk [vmem:[%s259] sm:$0x1] %vm258, %v257
  %s261 = scalar_lea.vmem %s0, 1
  %v262 = vld [vmem:[%s261] ss:$8 sm:$0xf]
  %s263 = scalar_lea.vmem %s0, 1
  %v264 = vld [vmem:[%s263] ss:$8 sm:$0xf0]
  %vm265 = vcmask 1047556
  %v266 = vsel %vm265, %v264, %v262
  %267 = vrot.lane.b32.xlu0 %v266, 17
  %v268 = vpop.permute.xlu0 %267
  %vm269 = vcmask 277640
  %270 = vst.msk [vmem:[%s1] sm:$0xff] %vm269, %v268
  %s271 = scalar_lea.vmem %s0, 129
  %v272 = vld [vmem:[%s271] sm:$0x1]
  %s273 = scalar_lea.vmem %s0, 57
  %v274 = vld [vmem:[%s273] ss:$8 sm:$0x1e]
  %vm275 = vcmask 1044481
  %v276 = vsel %vm275, %v274, %v272
  %s277 = scalar_lea.vmem %s0, 57
  %v278 = vld [vmem:[%s277] ss:$8 sm:$0xe0]
  %vm279 = vcmask 1047557
  %v280 = vsel %vm279, %v278, %v276
  %281 = vrot.lane.b32.xlu0 %v280, 17
  %v282 = vpop.permute.xlu0 %281
  %vm283 = vcmask 277640
  %s284 = scalar_lea.vmem %s1, 32
  %285 = vst.msk [vmem:[%s284] ss:$-16 sm:$0x3] %vm283, %v282
  %s286 = scalar_lea.vmem %s1, 15
  %287 = vst.msk [vmem:[%s286] sm:$0xfc] %vm283, %v282
  %s288 = scalar_lea.vmem %s0, 121
  %v289 = vld [vmem:[%s288] sm:$0x1]
  %290 = vrot.lane.b32.xlu0 %v289, 17
  %v291 = vpop.permute.xlu0 %290
  %vm292 = vcmask 277640
  %s293 = scalar_lea.vmem %s1, 23
  %294 = vst.msk [vmem:[%s293] sm:$0x1] %vm292, %v291

// kernel: tile.23
$region0: #{tile.23}
  #allocation0 [shape = 's32[1]{0}', space=sflag, size = 0x4, scoped, tag = 'scoped memory for tile.23']
  %s0 = inlined_call_operand.vmem [shape: f32[17], index: 0, kind: input, shape index: {}]
  %s1 = inlined_call_operand.vmem [shape: f32[8,17], index: 1, kind: output, shape index: {}]
  // Predicated region
  $region2: #{tile.23} parent=0 // pred_check
    _
  $region3: #{tile.23} parent=0 // pred_check_branch
    %3 = sbr.rel (0) target = $region5
  $region4: #{tile.23} parent=0 // pred_region
    _
  $region5: #{tile.23} parent=0 // pred_fallthru
    _
  %v4 = vld [vmem:[%s0] ss:$0 sm:$0xff]
  %5 = vst [vmem:[%s1] sm:$0xff] %v4

// kernel: tile.0
$region0: #{tile.0}
  %s0 = inlined_call_operand.vmem [shape: f32[8,17], index: 0, kind: input, shape index: {}]
  %s1 = inlined_call_operand.vmem [shape: f32[1,136,1], index: 1, kind: output, shape index: {}]
  %v2 = vld [vmem:[%s0] sm:$0xff]
  %vm3 = vcmask 7168
  %4 = vst.msk [vmem:[%s1] ss:$17 sm:$0xff] %vm3, %v2
  %v5 = vld.sshfl [vmem:[%s0] sm:$0xff pattern:$0x75316420]
  %6 = vrot.lane.b32.xlu0 %v5, 127
  %v7 = vpop.permute.xlu0 %6
  %vm8 = vcmask 7168
  %s9 = scalar_lea.vmem %s1, 1
  %10 = vst.msk [vmem:[%s9] ss:$34 sm:$0xf] %vm8, %v7
  %s11 = scalar_lea.vmem %s1, 4294967178
  %12 = vst.msk [vmem:[%s11] ss:$34 sm:$0xf0] %vm8, %v7
  %v13 = vld.sshfl [vmem:[%s0] sm:$0xff pattern:$0x75316420]
  %14 = vrot.lane.b32.xlu0 %v13, 126
  %v15 = vpop.permute.xlu0 %14
  %vm16 = vcmask 7168
  %s17 = scalar_lea.vmem %s1, 2
  %18 = vst.msk [vmem:[%s17] ss:$34 sm:$0xf] %vm16, %v15
  %s19 = scalar_lea.vmem %s1, 4294967179
  %20 = vst.msk [vmem:[%s19] ss:$34 sm:$0xf0] %vm16, %v15
  %v21 = vld.sshfl [vmem:[%s0] sm:$0xff pattern:$0x75316420]
  %22 = vrot.lane.b32.xlu0 %v21, 125
  %v23 = vpop.permute.xlu0 %22
  %vm24 = vcmask 7168
  %s25 = scalar_lea.vmem %s1, 3
  %26 = vst.msk [vmem:[%s25] ss:$34 sm:$0xf] %vm24, %v23
  %s27 = scalar_lea.vmem %s1, 4294967180
  %28 = vst.msk [vmem:[%s27] ss:$34 sm:$0xf0] %vm24, %v23
  %v29 = vld.sshfl [vmem:[%s0] sm:$0xff pattern:$0x75316420]
  %30 = vrot.lane.b32.xlu0 %v29, 124
  %v31 = vpop.permute.xlu0 %30
  %vm32 = vcmask 7168
  %s33 = scalar_lea.vmem %s1, 4
  %34 = vst.msk [vmem:[%s33] ss:$34 sm:$0xf] %vm32, %v31
  %s35 = scalar_lea.vmem %s1, 4294967181
  %36 = vst.msk [vmem:[%s35] ss:$34 sm:$0xf0] %vm32, %v31
  %v37 = vld.sshfl [vmem:[%s0] sm:$0xff pattern:$0x75316420]
  %38 = vrot.lane.b32.xlu0 %v37, 123
  %v39 = vpop.permute.xlu0 %38
  %vm40 = vcmask 7168
  %s41 = scalar_lea.vmem %s1, 5
  %42 = vst.msk [vmem:[%s41] ss:$34 sm:$0xf] %vm40, %v39
  %s43 = scalar_lea.vmem %s1, 4294967182
  %44 = vst.msk [vmem:[%s43] ss:$34 sm:$0xf0] %vm40, %v39
  %v45 = vld.sshfl [vmem:[%s0] sm:$0xff pattern:$0x75316420]
  %46 = vrot.lane.b32.xlu0 %v45, 122
  %v47 = vpop.permute.xlu0 %46
  %vm48 = vcmask 7168
  %s49 = scalar_lea.vmem %s1, 6
  %50 = vst.msk [vmem:[%s49] ss:$34 sm:$0xf] %vm48, %v47
  %s51 = scalar_lea.vmem %s1, 4294967183
  %52 = vst.msk [vmem:[%s51] ss:$34 sm:$0xf0] %vm48, %v47
  %v53 = vld.sshfl [vmem:[%s0] sm:$0xff pattern:$0x75316420]
  %54 = vrot.lane.b32.xlu0 %v53, 121
  %v55 = vpop.permute.xlu0 %54
  %vm56 = vcmask 7168
  %s57 = scalar_lea.vmem %s1, 7
  %58 = vst.msk [vmem:[%s57] ss:$34 sm:$0xf] %vm56, %v55
  %s59 = scalar_lea.vmem %s1, 4294967184
  %60 = vst.msk [vmem:[%s59] ss:$34 sm:$0xf0] %vm56, %v55
  %v61 = vld.sshfl [vmem:[%s0] sm:$0xff pattern:$0x75316420]
  %62 = vrot.lane.b32.xlu0 %v61, 120
  %v63 = vpop.permute.xlu0 %62
  %vm64 = vcmask 7168
  %s65 = scalar_lea.vmem %s1, 8
  %66 = vst.msk [vmem:[%s65] ss:$34 sm:$0xf] %vm64, %v63
  %s67 = scalar_lea.vmem %s1, 4294967185
  %68 = vst.msk [vmem:[%s67] ss:$34 sm:$0xf0] %vm64, %v63
  %v69 = vld.sshfl [vmem:[%s0] sm:$0xff pattern:$0x53164207]
  %70 = vrot.lane.b32.xlu0 %v69, 119
  %v71 = vpop.permute.xlu0 %70
  %vm72 = vcmask 7168
  %s73 = scalar_lea.vmem %s1, 128
  %74 = vst.msk [vmem:[%s73] ss:$-119 sm:$0x3] %vm72, %v71
  %s75 = scalar_lea.vmem %s1, 4294967271
  %76 = vst.msk [vmem:[%s75] ss:$34 sm:$0x1c] %vm72, %v71
  %s77 = scalar_lea.vmem %s1, 4294967152
  %78 = vst.msk [vmem:[%s77] ss:$34 sm:$0xe0] %vm72, %v71
  %v79 = vld.sshfl [vmem:[%s0] sm:$0xff pattern:$0x53164207]
  %80 = vrot.lane.b32.xlu0 %v79, 118
  %v81 = vpop.permute.xlu0 %80
  %vm82 = vcmask 7168
  %s83 = scalar_lea.vmem %s1, 129
  %84 = vst.msk [vmem:[%s83] ss:$-119 sm:$0x3] %vm82, %v81
  %s85 = scalar_lea.vmem %s1, 4294967272
  %86 = vst.msk [vmem:[%s85] ss:$34 sm:$0x1c] %vm82, %v81
  %s87 = scalar_lea.vmem %s1, 4294967153
  %88 = vst.msk [vmem:[%s87] ss:$34 sm:$0xe0] %vm82, %v81
  %v89 = vld.sshfl [vmem:[%s0] sm:$0xff pattern:$0x31642075]
  %90 = vrot.lane.b32.xlu0 %v89, 117
  %v91 = vpop.permute.xlu0 %90
  %vm92 = vcmask 7168
  %s93 = scalar_lea.vmem %s1, 96
  %94 = vst.msk [vmem:[%s93] ss:$34 sm:$0x3] %vm92, %v91
  %s95 = scalar_lea.vmem %s1, 4294967239
  %96 = vst.msk [vmem:[%s95] ss:$34 sm:$0x3c] %vm92, %v91
  %s97 = scalar_lea.vmem %s1, 4294967120
  %98 = vst.msk [vmem:[%s97] ss:$34 sm:$0xc0] %vm92, %v91
  %v99 = vld.sshfl [vmem:[%s0] sm:$0xff pattern:$0x31642075]
  %100 = vrot.lane.b32.xlu0 %v99, 116
  %v101 = vpop.permute.xlu0 %100
  %vm102 = vcmask 7168
  %s103 = scalar_lea.vmem %s1, 97
  %104 = vst.msk [vmem:[%s103] ss:$34 sm:$0x3] %vm102, %v101
  %s105 = scalar_lea.vmem %s1, 4294967240
  %106 = vst.msk [vmem:[%s105] ss:$34 sm:$0x3c] %vm102, %v101
  %s107 = scalar_lea.vmem %s1, 4294967121
  %108 = vst.msk [vmem:[%s107] ss:$34 sm:$0xc0] %vm102, %v101
  %v109 = vld.sshfl [vmem:[%s0] sm:$0xff pattern:$0x16420753]
  %110 = vrot.lane.b32.xlu0 %v109, 115
  %v111 = vpop.permute.xlu0 %110
  %vm112 = vcmask 7168
  %s113 = scalar_lea.vmem %s1, 64
  %114 = vst.msk [vmem:[%s113] ss:$34 sm:$0x7] %vm112, %v111
  %s115 = scalar_lea.vmem %s1, 4294967207
  %116 = vst.msk [vmem:[%s115] ss:$34 sm:$0x78] %vm112, %v111
  %s117 = scalar_lea.vmem %s1, 23
  %118 = vst.msk [vmem:[%s117] sm:$0x80] %vm112, %v111
  %v119 = vld.sshfl [vmem:[%s0] sm:$0xff pattern:$0x16420753]
  %120 = vrot.lane.b32.xlu0 %v119, 114
  %v121 = vpop.permute.xlu0 %120
  %vm122 = vcmask 7168
  %s123 = scalar_lea.vmem %s1, 65
  %124 = vst.msk [vmem:[%s123] ss:$34 sm:$0x7] %vm122, %v121
  %s125 = scalar_lea.vmem %s1, 4294967208
  %126 = vst.msk [vmem:[%s125] ss:$34 sm:$0x78] %vm122, %v121
  %s127 = scalar_lea.vmem %s1, 24
  %128 = vst.msk [vmem:[%s127] sm:$0x80] %vm122, %v121
  %v129 = vld.sshfl [vmem:[%s0] sm:$0xff pattern:$0x64207531]
  %130 = vrot.lane.b32.xlu0 %v129, 113
  %v131 = vpop.permute.xlu0 %130
  %vm132 = vcmask 7168
  %s133 = scalar_lea.vmem %s1, 32
  %134 = vst.msk [vmem:[%s133] ss:$34 sm:$0xf] %vm132, %v131
  %s135 = scalar_lea.vmem %s1, 4294967175
  %136 = vst.msk [vmem:[%s135] ss:$34 sm:$0xf0] %vm132, %v131
  %v137 = vld.sshfl [vmem:[%s0] sm:$0xff pattern:$0x64207531]
  %138 = vrot.lane.b32.xlu0 %v137, 112
  %v139 = vpop.permute.xlu0 %138
  %vm140 = vcmask 7168
  %s141 = scalar_lea.vmem %s1, 33
  %142 = vst.msk [vmem:[%s141] ss:$34 sm:$0xf] %vm140, %v139
  %s143 = scalar_lea.vmem %s1, 4294967176
  %144 = vst.msk [vmem:[%s143] ss:$34 sm:$0xf0] %vm140, %v139

// kernel: gcn_forward_pallas.3
$region0: #{gcn_forward_pallas.3}
  #allocation0 [shape = 'u32[]', space=smem, size = 0x4, offset = 0x4, fixed_abs, tag = 'smem constant byte address 0x4 - core index']
  #allocation1 [shape = 'u32[144,128]{1,0:T(1,128)}', space=vmem, size = 0x12000, scoped, tag = 'internal scratch']
  %s0 = inlined_call_operand.vmem [shape: f32[2,136,32], index: 0, kind: input, shape index: {}]
  %s1 = inlined_call_operand.vmem [shape: bf16[2,136,32], index: 1, kind: input, shape index: {}]
  %s2 = inlined_call_operand.vmem [shape: f32[1,136,1], index: 2, kind: input, shape index: {}]
  %s3 = inlined_call_operand.vmem [shape: f32[1,136,1], index: 3, kind: input, shape index: {}]
  %s4 = inlined_call_operand.vmem [shape: f32[2,136,32], index: 4, kind: output, shape index: {}]
  %s5 = sld [smem:[#allocation0]]
  $region49: #{gcn_forward_pallas.3} parent=0
    _
  %s7 = ssub.s32 1, %s5
  %s8 = scalar_select 0, %s7, %s5
  loop: start=0, step=1, limit=4
  $region2: #{gcn_forward_pallas.3} parent=0 // loop_pre_header
    _
  $region3: #{gcn_forward_pallas.3} parent=0 // loop_header
    %s10 = sphi 0, %s14
    %p11 = scmp.ge.s32.totalorder %s10, 4
    %s20 = sphi 0, %s22
    %s23 = sphi 0, %s20
    %s24 = sphi 0, %s23
    %s40 = sphi 0, %s24
    %s46 = sphi 0, %s48
    %s49 = sphi 0, %s46
    %s50 = sphi 0, %s49
    %s66 = sphi 0, %s50
    %s70 = sphi 0, %s70
    %s72 = sphi 0, %s70
    %s73 = sphi 0, %s72
    %s87 = sphi 0, %s73
    %s91 = sphi 0, %s91
    %s93 = sphi 0, %s91
    %s94 = sphi 0, %s93
    %s108 = sphi 0, %s94
    %s114 = sphi 0, %s116
    %s117 = sphi 0, %s114
    %s118 = sphi 0, %s117
    %s134 = sphi 0, %s118
  $region4: #{gcn_forward_pallas.3} parent=0 // loop_header_branch
    %13 = sbr.rel (%p11) target = $region8
  $region5: #{gcn_forward_pallas.3} parent=0 // loop_body
    %s15 = ssub.s32 %s10, 1
    %s16 = ssub.s32 %s10, 2
    %s17 = sadd.s32 %s10, 1
    %s18 = ssub.s32 %s10, %s17
    %p19 = scmp.eq.s32.totalorder %s18, 0
    %s21 = sadd.s32 %s20, 1
    %s22 = scalar_select %p19, %s20, %s21
    %p25 = pneg %p19
    %p26 = scmp.eq.s32.totalorder %s10, 1
    %p27 = por %p25, %p26
    %p28 = scmp.ne.s32.totalorder %s20, %s23
    %p29 = scmp.eq.s32.totalorder %s10, 0
    %p30 = por %p28, %p29
    %p31 = scmp.ne.s32.totalorder %s20, %s23
    %p32 = scmp.eq.s32.totalorder %s15, 1
    %p33 = por %p31, %p32
    %p34 = scmp.ne.s32.totalorder %s23, %s24
    %p35 = scmp.eq.s32.totalorder %s15, 0
    %p36 = por %p34, %p35
    %p37 = scmp.ne.s32.totalorder %s23, %s24
    %p38 = scmp.eq.s32.totalorder %s16, 1
    %p39 = por %p37, %p38
    %p41 = scmp.ne.s32.totalorder %s24, %s40
    %p42 = scmp.eq.s32.totalorder %s16, 0
    %p43 = por %p41, %p42
    %s44 = ssub.s32 %s10, %s17
    %p45 = scmp.eq.s32.totalorder %s44, 0
    %s47 = sadd.s32 %s46, 1
    %s48 = scalar_select %p45, %s46, %s47
    %p51 = pneg %p45
    %p52 = scmp.eq.s32.totalorder %s10, 1
    %p53 = por %p51, %p52
    %p54 = scmp.ne.s32.totalorder %s46, %s49
    %p55 = scmp.eq.s32.totalorder %s10, 0
    %p56 = por %p54, %p55
    %p57 = scmp.ne.s32.totalorder %s46, %s49
    %p58 = scmp.eq.s32.totalorder %s15, 1
    %p59 = por %p57, %p58
    %p60 = scmp.ne.s32.totalorder %s49, %s50
    %p61 = scmp.eq.s32.totalorder %s15, 0
    %p62 = por %p60, %p61
    %p63 = scmp.ne.s32.totalorder %s49, %s50
    %p64 = scmp.eq.s32.totalorder %s16, 1
    %p65 = por %p63, %p64
    %p67 = scmp.ne.s32.totalorder %s50, %s66
    %p68 = scmp.eq.s32.totalorder %s16, 0
    %p69 = por %p67, %p68
    %s71 = sadd.s32 %s70, 1
    %p74 = scmp.eq.s32.totalorder %s10, 1
    %p75 = scmp.ne.s32.totalorder %s70, %s72
    %p76 = scmp.eq.s32.totalorder %s10, 0
    %p77 = por %p75, %p76
    %p78 = scmp.ne.s32.totalorder %s70, %s72
    %p79 = scmp.eq.s32.totalorder %s15, 1
    %p80 = por %p78, %p79
    %p81 = scmp.ne.s32.totalorder %s72, %s73
    %p82 = scmp.eq.s32.totalorder %s15, 0
    %p83 = por %p81, %p82
    %p84 = scmp.ne.s32.totalorder %s72, %s73
    %p85 = scmp.eq.s32.totalorder %s16, 1
    %p86 = por %p84, %p85
    %p88 = scmp.ne.s32.totalorder %s73, %s87
    %p89 = scmp.eq.s32.totalorder %s16, 0
    %p90 = por %p88, %p89
    %s92 = sadd.s32 %s91, 1
    %p95 = scmp.eq.s32.totalorder %s10, 1
    %p96 = scmp.ne.s32.totalorder %s91, %s93
    %p97 = scmp.eq.s32.totalorder %s10, 0
    %p98 = por %p96, %p97
    %p99 = scmp.ne.s32.totalorder %s91, %s93
    %p100 = scmp.eq.s32.totalorder %s15, 1
    %p101 = por %p99, %p100
    %p102 = scmp.ne.s32.totalorder %s93, %s94
    %p103 = scmp.eq.s32.totalorder %s15, 0
    %p104 = por %p102, %p103
    %p105 = scmp.ne.s32.totalorder %s93, %s94
    %p106 = scmp.eq.s32.totalorder %s16, 1
    %p107 = por %p105, %p106
    %p109 = scmp.ne.s32.totalorder %s94, %s108
    %p110 = scmp.eq.s32.totalorder %s16, 0
    %p111 = por %p109, %p110
    %s112 = ssub.s32 %s10, %s17
    %p113 = scmp.eq.s32.totalorder %s112, 0
    %s115 = sadd.s32 %s114, 1
    %s116 = scalar_select %p113, %s114, %s115
    %p119 = pneg %p113
    %p120 = scmp.eq.s32.totalorder %s10, 1
    %p121 = por %p119, %p120
    %p122 = scmp.ne.s32.totalorder %s114, %s117
    %p123 = scmp.eq.s32.totalorder %s10, 0
    %p124 = por %p122, %p123
    %p125 = scmp.ne.s32.totalorder %s114, %s117
    %p126 = scmp.eq.s32.totalorder %s15, 1
    %p127 = por %p125, %p126
    %p128 = scmp.ne.s32.totalorder %s117, %s118
    %p129 = scmp.eq.s32.totalorder %s15, 0
    %p130 = por %p128, %p129
    %p131 = scmp.ne.s32.totalorder %s117, %s118
    %p132 = scmp.eq.s32.totalorder %s16, 1
    %p133 = por %p131, %p132
    %p135 = scmp.ne.s32.totalorder %s118, %s134
    %p136 = scmp.eq.s32.totalorder %s16, 0
    %p137 = por %p135, %p136
    %p138 = scmp.le.s32.totalorder 1, %s10
    %p139 = scmp.lt.s32.totalorder %s10, 3
    %p140 = pnand %p138, %p139
    %p141 = pneg %p140
    // Predicated region
    $region9: #{gcn_forward_pallas.3} parent=5 // pred_check
      _
    $region10: #{gcn_forward_pallas.3} parent=5 // pred_check_branch
      %143 = sbr.rel (%p140) target = $region12
    $region11: #{gcn_forward_pallas.3} parent=5 // pred_region
      %s144 = ssub.s32 %s10, 1
      // Predicated region
      $region13: #{gcn_forward_pallas.3} parent=11 // pred_check
        %p145 = pneg %p83
      $region14: #{gcn_forward_pallas.3} parent=11 // pred_check_branch
        %147 = sbr.rel (%p145) target = $region16
      $region15: #{gcn_forward_pallas.3} parent=11 // pred_region
        _
      $region16: #{gcn_forward_pallas.3} parent=11 // pred_fallthru
        _
      // Predicated region
      $region17: #{gcn_forward_pallas.3} parent=11 // pred_check
        %p148 = pneg %p104
      $region18: #{gcn_forward_pallas.3} parent=11 // pred_check_branch
        %150 = sbr.rel (%p148) target = $region20
      $region19: #{gcn_forward_pallas.3} parent=11 // pred_region
        _
      $region20: #{gcn_forward_pallas.3} parent=11 // pred_fallthru
        _
    $region12: #{gcn_forward_pallas.3} parent=5 // pred_fallthru
      _
    %p151 = scmp.lt.s32.totalorder %s10, 2
    // Predicated region
    $region21: #{gcn_forward_pallas.3} parent=5 // pred_check
      %p152 = pneg %p151
    $region22: #{gcn_forward_pallas.3} parent=5 // pred_check_branch
      %154 = sbr.rel (%p152) target = $region24
    $region23: #{gcn_forward_pallas.3} parent=5 // pred_region
      // Predicated region
      $region25: #{gcn_forward_pallas.3} parent=23 // pred_check
        %p155 = pneg %p30
      $region26: #{gcn_forward_pallas.3} parent=23 // pred_check_branch
        %157 = sbr.rel (%p155) target = $region28
      $region27: #{gcn_forward_pallas.3} parent=23 // pred_region
        %p158 = scmp.lt.s32.totalorder %s10, 1
        %s159 = scalar_select %p158, %s10, 1
        %s160 = smul.addr %s159, 17
        %s161 = smul.addr %s160, 8
        %s162 = scalar_lea.vmem %s0, %s161
      $region28: #{gcn_forward_pallas.3} parent=23 // pred_fallthru
        _
      // Predicated region
      $region29: #{gcn_forward_pallas.3} parent=23 // pred_check
        %p163 = pneg %p56
      $region30: #{gcn_forward_pallas.3} parent=23 // pred_check_branch
        %165 = sbr.rel (%p163) target = $region32
      $region31: #{gcn_forward_pallas.3} parent=23 // pred_region
        %p166 = scmp.lt.s32.totalorder %s10, 1
        %s167 = scalar_select %p166, %s10, 1
        %s168 = smul.addr %s167, 17
        %s169 = smul.addr %s168, 4
        %s170 = scalar_lea.vmem %s1, %s169
      $region32: #{gcn_forward_pallas.3} parent=23 // pred_fallthru
        _
    $region24: #{gcn_forward_pallas.3} parent=5 // pred_fallthru
      _
    %p171 = scmp.le.s32.totalorder 1, %s10
    %p172 = scmp.lt.s32.totalorder %s10, 3
    %p173 = pnand %p171, %p172
    %p174 = pneg %p173
    // Predicated region
    $region33: #{gcn_forward_pallas.3} parent=5 // pred_check
      _
    $region34: #{gcn_forward_pallas.3} parent=5 // pred_check_branch
      %176 = sbr.rel (%p173) target = $region36
    $region35: #{gcn_forward_pallas.3} parent=5 // pred_region
      %s177 = ssub.s32 %s10, 1
      %p178 = scmp.lt.s32.totalorder %s15, 1
      %s179 = scalar_select %p178, %s15, 1
      %s180 = smul.addr %s179, 17
      %s181 = smul.addr %s180, 8
      %s182 = scalar_lea.vmem %s0, %s181
      %p183 = pneg %p36
      %p184 = pneg %p33
      %p185 = scmp.lt.s32.totalorder %s15, 1
      %s186 = scalar_select %p185, %s15, 1
      %s187 = smul.addr %s186, 17
      %s188 = smul.addr %s187, 4
      %s189 = scalar_lea.vmem %s1, %s188
      %p190 = pneg %p62
      %p191 = pneg %p59
      %p192 = pneg %p83
      %p193 = pneg %p80
      %p194 = pneg %p104
      %p195 = pneg %p101
      %p196 = pneg %p130
      %p197 = pneg %p127
      %p198 = scmp.lt.s32.totalorder %s15, 1
      %s199 = scalar_select %p198, %s15, 1
      %s200 = smul.addr %s199, 17
      %s201 = smul.addr %s200, 8
      %s202 = scalar_lea.vmem %s4, %s201
      %p203 = scmp.lt.s32.totalorder %s15, 1
      %s204 = scalar_select %p203, %s15, 1
      %s205 = smul.addr %s204, 17
      %s206 = smul.addr %s205, 8
      %s207 = scalar_lea.vmem %s0, %s206
      %p208 = scmp.lt.s32.totalorder %s15, 1
      %s209 = scalar_select %p208, %s15, 1
      %s210 = smul.addr %s209, 17
      %s211 = smul.addr %s210, 4
      %s212 = scalar_lea.vmem %s1, %s211
      %p213 = scmp.lt.s32.totalorder %s15, 1
      %s214 = scalar_select %p213, %s15, 1
      %s215 = smul.addr %s214, 17
      %s216 = smul.addr %s215, 8
      %s217 = scalar_lea.vmem %s4, %s216
      %v218 = vld [vmem:[%s207] sm:$0xff]
      %v219 = vld [vmem:[%s207 + $0x8] sm:$0xff]
      %v220 = vld [vmem:[%s207 + $0x10] sm:$0xff]
      %v221 = vld [vmem:[%s207 + $0x18] sm:$0xff]
      %v222 = vld [vmem:[%s207 + $0x20] sm:$0xff]
      %v223 = vld [vmem:[%s207 + $0x28] sm:$0xff]
      %v224 = vld [vmem:[%s207 + $0x30] sm:$0xff]
      %v225 = vld [vmem:[%s207 + $0x38] sm:$0xff]
      %v226 = vld [vmem:[%s207 + $0x40] sm:$0xff]
      %v227 = vld [vmem:[%s207 + $0x48] sm:$0xff]
      %v228 = vld [vmem:[%s207 + $0x50] sm:$0xff]
      %v229 = vld [vmem:[%s207 + $0x58] sm:$0xff]
      %v230 = vld [vmem:[%s207 + $0x60] sm:$0xff]
      %v231 = vld [vmem:[%s207 + $0x68] sm:$0xff]
      %v232 = vld [vmem:[%s207 + $0x70] sm:$0xff]
      %v233 = vld [vmem:[%s207 + $0x78] sm:$0xff]
      %v234 = vld [vmem:[%s207 + $0x80] sm:$0xff]
      %v235 = vld [vmem:[%s212] sm:$0xf]
      %v236 = vld [vmem:[%s212 + $0x4] sm:$0xf]
      %v237 = vld [vmem:[%s212 + $0x8] sm:$0xf]
      %v238 = vld [vmem:[%s212 + $0xc] sm:$0xf]
      %v239 = vld [vmem:[%s212 + $0x10] sm:$0xf]
      %v240 = vld [vmem:[%s212 + $0x14] sm:$0xf]
      %v241 = vld [vmem:[%s212 + $0x18] sm:$0xf]
      %v242 = vld [vmem:[%s212 + $0x1c] sm:$0xf]
      %v243 = vld [vmem:[%s212 + $0x20] sm:$0xf]
      %v244 = vld [vmem:[%s212 + $0x24] sm:$0xf]
      %v245 = vld [vmem:[%s212 + $0x28] sm:$0xf]
      %v246 = vld [vmem:[%s212 + $0x2c] sm:$0xf]
      %v247 = vld [vmem:[%s212 + $0x30] sm:$0xf]
      %v248 = vld [vmem:[%s212 + $0x34] sm:$0xf]
      %v249 = vld [vmem:[%s212 + $0x38] sm:$0xf]
      %v250 = vld [vmem:[%s212 + $0x3c] sm:$0xf]
      %v251 = vld [vmem:[%s212 + $0x40] sm:$0xf]
      %v252 = vunpack.c.l.bf16 %v235
      %v253 = vunpack.c.l.bf16 %v236
      %v254 = vunpack.c.l.bf16 %v237
      %v255 = vunpack.c.l.bf16 %v238
      %v256 = vunpack.c.l.bf16 %v239
      %v257 = vunpack.c.l.bf16 %v240
      %v258 = vunpack.c.l.bf16 %v241
      %v259 = vunpack.c.l.bf16 %v242
      %v260 = vunpack.c.l.bf16 %v243
      %v261 = vunpack.c.l.bf16 %v244
      %v262 = vunpack.c.l.bf16 %v245
      %v263 = vunpack.c.l.bf16 %v246
      %v264 = vunpack.c.l.bf16 %v247
      %v265 = vunpack.c.l.bf16 %v248
      %v266 = vunpack.c.l.bf16 %v249
      %v267 = vunpack.c.l.bf16 %v250
      %v268 = vunpack.c.l.bf16 %v251
      %v269 = vld [vmem:[%s2] sm:$0xff]
      %v270 = vld [vmem:[%s2 + $0x8] sm:$0xff]
      %v271 = vld [vmem:[%s2 + $0x10] sm:$0xff]
      %v272 = vld [vmem:[%s2 + $0x18] sm:$0xff]
      %v273 = vld [vmem:[%s2 + $0x20] sm:$0xff]
      %v274 = vld [vmem:[%s2 + $0x28] sm:$0xff]
      %v275 = vld [vmem:[%s2 + $0x30] sm:$0xff]
      %v276 = vld [vmem:[%s2 + $0x38] sm:$0xff]
      %v277 = vld [vmem:[%s2 + $0x40] sm:$0xff]
      %v278 = vld [vmem:[%s2 + $0x48] sm:$0xff]
      %v279 = vld [vmem:[%s2 + $0x50] sm:$0xff]
      %v280 = vld [vmem:[%s2 + $0x58] sm:$0xff]
      %v281 = vld [vmem:[%s2 + $0x60] sm:$0xff]
      %v282 = vld [vmem:[%s2 + $0x68] sm:$0xff]
      %v283 = vld [vmem:[%s2 + $0x70] sm:$0xff]
      %v284 = vld [vmem:[%s2 + $0x78] sm:$0xff]
      %v285 = vld [vmem:[%s2 + $0x80] sm:$0xff]
      %287 = vset.pattern.permute.xlu0 0
      %288 = vperm.xlu0 %287, %v269
      %v289 = vpop.permute.xlu0 %288
      %292 = vset.pattern.permute.xlu0 0
      %293 = vperm.xlu0 %292, %v270
      %v294 = vpop.permute.xlu0 %293
      %297 = vset.pattern.permute.xlu0 0
      %298 = vperm.xlu0 %297, %v271
      %v299 = vpop.permute.xlu0 %298
      %302 = vset.pattern.permute.xlu0 0
      %303 = vperm.xlu0 %302, %v272
      %v304 = vpop.permute.xlu0 %303
      %307 = vset.pattern.permute.xlu0 0
      %308 = vperm.xlu0 %307, %v273
      %v309 = vpop.permute.xlu0 %308
      %312 = vset.pattern.permute.xlu0 0
      %313 = vperm.xlu0 %312, %v274
      %v314 = vpop.permute.xlu0 %313
      %317 = vset.pattern.permute.xlu0 0
      %318 = vperm.xlu0 %317, %v275
      %v319 = vpop.permute.xlu0 %318
      %322 = vset.pattern.permute.xlu0 0
      %323 = vperm.xlu0 %322, %v276
      %v324 = vpop.permute.xlu0 %323
      %327 = vset.pattern.permute.xlu0 0
      %328 = vperm.xlu0 %327, %v277
      %v329 = vpop.permute.xlu0 %328
      %332 = vset.pattern.permute.xlu0 0
      %333 = vperm.xlu0 %332, %v278
      %v334 = vpop.permute.xlu0 %333
      %337 = vset.pattern.permute.xlu0 0
      %338 = vperm.xlu0 %337, %v279
      %v339 = vpop.permute.xlu0 %338
      %342 = vset.pattern.permute.xlu0 0
      %343 = vperm.xlu0 %342, %v280
      %v344 = vpop.permute.xlu0 %343
      %347 = vset.pattern.permute.xlu0 0
      %348 = vperm.xlu0 %347, %v281
      %v349 = vpop.permute.xlu0 %348
      %352 = vset.pattern.permute.xlu0 0
      %353 = vperm.xlu0 %352, %v282
      %v354 = vpop.permute.xlu0 %353
      %357 = vset.pattern.permute.xlu0 0
      %358 = vperm.xlu0 %357, %v283
      %v359 = vpop.permute.xlu0 %358
      %362 = vset.pattern.permute.xlu0 0
      %363 = vperm.xlu0 %362, %v284
      %v364 = vpop.permute.xlu0 %363
      %367 = vset.pattern.permute.xlu0 0
      %368 = vperm.xlu0 %367, %v285
      %v369 = vpop.permute.xlu0 %368
      %v371 = vmul.f32 %v252, %v289
      %v372 = vmul.f32 %v253, %v294
      %v373 = vmul.f32 %v254, %v299
      %v374 = vmul.f32 %v255, %v304
      %v375 = vmul.f32 %v256, %v309
      %v376 = vmul.f32 %v257, %v314
      %v377 = vmul.f32 %v258, %v319
      %v378 = vmul.f32 %v259, %v324
      %v379 = vmul.f32 %v260, %v329
      %v380 = vmul.f32 %v261, %v334
      %v381 = vmul.f32 %v262, %v339
      %v382 = vmul.f32 %v263, %v344
      %v383 = vmul.f32 %v264, %v349
      %v384 = vmul.f32 %v265, %v354
      %v385 = vmul.f32 %v266, %v359
      %v386 = vmul.f32 %v267, %v364
      %v387 = vmul.f32 %v268, %v369
      %v388 = vadd.f32 %v218, %v371
      %v389 = vadd.f32 %v219, %v372
      %v390 = vadd.f32 %v220, %v373
      %v391 = vadd.f32 %v221, %v374
      %v392 = vadd.f32 %v222, %v375
      %v393 = vadd.f32 %v223, %v376
      %v394 = vadd.f32 %v224, %v377
      %v395 = vadd.f32 %v225, %v378
      %v396 = vadd.f32 %v226, %v379
      %v397 = vadd.f32 %v227, %v380
      %v398 = vadd.f32 %v228, %v381
      %v399 = vadd.f32 %v229, %v382
      %v400 = vadd.f32 %v230, %v383
      %v401 = vadd.f32 %v231, %v384
      %v402 = vadd.f32 %v232, %v385
      %v403 = vadd.f32 %v233, %v386
      %v404 = vadd.f32 %v234, %v387
      %v405 = vld [vmem:[%s3] sm:$0xff]
      %v406 = vld [vmem:[%s3 + $0x8] sm:$0xff]
      %v407 = vld [vmem:[%s3 + $0x10] sm:$0xff]
      %v408 = vld [vmem:[%s3 + $0x18] sm:$0xff]
      %v409 = vld [vmem:[%s3 + $0x20] sm:$0xff]
      %v410 = vld [vmem:[%s3 + $0x28] sm:$0xff]
      %v411 = vld [vmem:[%s3 + $0x30] sm:$0xff]
      %v412 = vld [vmem:[%s3 + $0x38] sm:$0xff]
      %v413 = vld [vmem:[%s3 + $0x40] sm:$0xff]
      %v414 = vld [vmem:[%s3 + $0x48] sm:$0xff]
      %v415 = vld [vmem:[%s3 + $0x50] sm:$0xff]
      %v416 = vld [vmem:[%s3 + $0x58] sm:$0xff]
      %v417 = vld [vmem:[%s3 + $0x60] sm:$0xff]
      %v418 = vld [vmem:[%s3 + $0x68] sm:$0xff]
      %v419 = vld [vmem:[%s3 + $0x70] sm:$0xff]
      %v420 = vld [vmem:[%s3 + $0x78] sm:$0xff]
      %v421 = vld [vmem:[%s3 + $0x80] sm:$0xff]
      %423 = vset.pattern.permute.xlu0 0
      %424 = vperm.xlu0 %423, %v405
      %v425 = vpop.permute.xlu0 %424
      %428 = vset.pattern.permute.xlu0 0
      %429 = vperm.xlu0 %428, %v406
      %v430 = vpop.permute.xlu0 %429
      %433 = vset.pattern.permute.xlu0 0
      %434 = vperm.xlu0 %433, %v407
      %v435 = vpop.permute.xlu0 %434
      %438 = vset.pattern.permute.xlu0 0
      %439 = vperm.xlu0 %438, %v408
      %v440 = vpop.permute.xlu0 %439
      %443 = vset.pattern.permute.xlu0 0
      %444 = vperm.xlu0 %443, %v409
      %v445 = vpop.permute.xlu0 %444
      %448 = vset.pattern.permute.xlu0 0
      %449 = vperm.xlu0 %448, %v410
      %v450 = vpop.permute.xlu0 %449
      %453 = vset.pattern.permute.xlu0 0
      %454 = vperm.xlu0 %453, %v411
      %v455 = vpop.permute.xlu0 %454
      %458 = vset.pattern.permute.xlu0 0
      %459 = vperm.xlu0 %458, %v412
      %v460 = vpop.permute.xlu0 %459
      %463 = vset.pattern.permute.xlu0 0
      %464 = vperm.xlu0 %463, %v413
      %v465 = vpop.permute.xlu0 %464
      %468 = vset.pattern.permute.xlu0 0
      %469 = vperm.xlu0 %468, %v414
      %v470 = vpop.permute.xlu0 %469
      %473 = vset.pattern.permute.xlu0 0
      %474 = vperm.xlu0 %473, %v415
      %v475 = vpop.permute.xlu0 %474
      %478 = vset.pattern.permute.xlu0 0
      %479 = vperm.xlu0 %478, %v416
      %v480 = vpop.permute.xlu0 %479
      %483 = vset.pattern.permute.xlu0 0
      %484 = vperm.xlu0 %483, %v417
      %v485 = vpop.permute.xlu0 %484
      %488 = vset.pattern.permute.xlu0 0
      %489 = vperm.xlu0 %488, %v418
      %v490 = vpop.permute.xlu0 %489
      %493 = vset.pattern.permute.xlu0 0
      %494 = vperm.xlu0 %493, %v419
      %v495 = vpop.permute.xlu0 %494
      %498 = vset.pattern.permute.xlu0 0
      %499 = vperm.xlu0 %498, %v420
      %v500 = vpop.permute.xlu0 %499
      %503 = vset.pattern.permute.xlu0 0
      %504 = vperm.xlu0 %503, %v421
      %v505 = vpop.permute.xlu0 %504
      %v507 = vadd.f32 %v388, %v425
      %v508 = vadd.f32 %v389, %v430
      %v509 = vadd.f32 %v390, %v435
      %v510 = vadd.f32 %v391, %v440
      %v511 = vadd.f32 %v392, %v445
      %v512 = vadd.f32 %v393, %v450
      %v513 = vadd.f32 %v394, %v455
      %v514 = vadd.f32 %v395, %v460
      %v515 = vadd.f32 %v396, %v465
      %v516 = vadd.f32 %v397, %v470
      %v517 = vadd.f32 %v398, %v475
      %v518 = vadd.f32 %v399, %v480
      %v519 = vadd.f32 %v400, %v485
      %v520 = vadd.f32 %v401, %v490
      %v521 = vadd.f32 %v402, %v495
      %v522 = vadd.f32 %v403, %v500
      %v523 = vadd.f32 %v404, %v505
      %v524 = vmax.f32 %v507, 0.0
      %v525 = vmax.f32 %v508, 0.0
      %v526 = vmax.f32 %v509, 0.0
      %v527 = vmax.f32 %v510, 0.0
      %v528 = vmax.f32 %v511, 0.0
      %v529 = vmax.f32 %v512, 0.0
      %v530 = vmax.f32 %v513, 0.0
      %v531 = vmax.f32 %v514, 0.0
      %v532 = vmax.f32 %v515, 0.0
      %v533 = vmax.f32 %v516, 0.0
      %v534 = vmax.f32 %v517, 0.0
      %v535 = vmax.f32 %v518, 0.0
      %v536 = vmax.f32 %v519, 0.0
      %v537 = vmax.f32 %v520, 0.0
      %v538 = vmax.f32 %v521, 0.0
      %v539 = vmax.f32 %v522, 0.0
      %v540 = vmax.f32 %v523, 0.0
      %vm541 = vcmask 261120
      %542 = vst.msk [vmem:[%s217] sm:$0xff] %vm541, %v524
      %543 = vst.msk [vmem:[%s217 + $0x8] sm:$0xff] %vm541, %v525
      %544 = vst.msk [vmem:[%s217 + $0x10] sm:$0xff] %vm541, %v526
      %545 = vst.msk [vmem:[%s217 + $0x18] sm:$0xff] %vm541, %v527
      %546 = vst.msk [vmem:[%s217 + $0x20] sm:$0xff] %vm541, %v528
      %547 = vst.msk [vmem:[%s217 + $0x28] sm:$0xff] %vm541, %v529
      %548 = vst.msk [vmem:[%s217 + $0x30] sm:$0xff] %vm541, %v530
      %549 = vst.msk [vmem:[%s217 + $0x38] sm:$0xff] %vm541, %v531
      %550 = vst.msk [vmem:[%s217 + $0x40] sm:$0xff] %vm541, %v532
      %551 = vst.msk [vmem:[%s217 + $0x48] sm:$0xff] %vm541, %v533
      %552 = vst.msk [vmem:[%s217 + $0x50] sm:$0xff] %vm541, %v534
      %553 = vst.msk [vmem:[%s217 + $0x58] sm:$0xff] %vm541, %v535
      %554 = vst.msk [vmem:[%s217 + $0x60] sm:$0xff] %vm541, %v536
      %555 = vst.msk [vmem:[%s217 + $0x68] sm:$0xff] %vm541, %v537
      %556 = vst.msk [vmem:[%s217 + $0x70] sm:$0xff] %vm541, %v538
      %557 = vst.msk [vmem:[%s217 + $0x78] sm:$0xff] %vm541, %v539
      %558 = vst.msk [vmem:[%s217 + $0x80] sm:$0xff] %vm541, %v540
      %p559 = scmp.lt.s32.totalorder %s15, 1
      %s560 = scalar_select %p559, %s15, 1
      %s561 = smul.addr %s560, 17
      %s562 = smul.addr %s561, 8
      %s563 = scalar_lea.vmem %s4, %s562
      // Predicated region
      $region37: #{gcn_forward_pallas.3} parent=35 // pred_check
        %p564 = pneg %p127
      $region38: #{gcn_forward_pallas.3} parent=35 // pred_check_branch
        %566 = sbr.rel (%p564) target = $region40
      $region39: #{gcn_forward_pallas.3} parent=35 // pred_region
        _
      $region40: #{gcn_forward_pallas.3} parent=35 // pred_fallthru
        _
    $region36: #{gcn_forward_pallas.3} parent=5 // pred_fallthru
      _
    %p567 = scmp.le.s32.totalorder 2, %s10
    // Predicated region
    $region41: #{gcn_forward_pallas.3} parent=5 // pred_check
      %p568 = pneg %p567
    $region42: #{gcn_forward_pallas.3} parent=5 // pred_check_branch
      %570 = sbr.rel (%p568) target = $region44
    $region43: #{gcn_forward_pallas.3} parent=5 // pred_region
      %s571 = ssub.s32 %s10, 2
      // Predicated region
      $region45: #{gcn_forward_pallas.3} parent=43 // pred_check
        %p572 = pneg %p133
      $region46: #{gcn_forward_pallas.3} parent=43 // pred_check_branch
        %574 = sbr.rel (%p572) target = $region48
      $region47: #{gcn_forward_pallas.3} parent=43 // pred_region
        %p575 = scmp.lt.s32.totalorder %s16, 1
        %s576 = scalar_select %p575, %s16, 1
        %s577 = smul.addr %s576, 17
        %s578 = smul.addr %s577, 8
        %s579 = scalar_lea.vmem %s4, %s578
      $region48: #{gcn_forward_pallas.3} parent=43 // pred_fallthru
        _
    $region44: #{gcn_forward_pallas.3} parent=5 // pred_fallthru
      _
  $region6: #{gcn_forward_pallas.3} parent=0 // loop_footer
    %s14 = sadd.s32 1, %s10
  $region7: #{gcn_forward_pallas.3} parent=0 // loop_footer_branch
    %9 = sbr.rel target = $region3
  $region8: #{gcn_forward_pallas.3} parent=0 // loop_exit
    _

// kernel: gcn_forward_pallas.2
$region0: #{gcn_forward_pallas.2}
  #allocation0 [shape = 'u32[]', space=smem, size = 0x4, offset = 0x4, fixed_abs, tag = 'smem constant byte address 0x4 - core index']
  #allocation1 [shape = 'u32[144,128]{1,0:T(1,128)}', space=vmem, size = 0x12000, scoped, tag = 'internal scratch']
  %s0 = inlined_call_operand.vmem [shape: f32[2,136,32], index: 0, kind: input, shape index: {}]
  %s1 = inlined_call_operand.vmem [shape: f32[32,64], index: 1, kind: input, shape index: {}]
  %s2 = inlined_call_operand.vmem [shape: f32[1,64], index: 2, kind: input, shape index: {}]
  %s3 = inlined_call_operand.vmem [shape: f32[136,136], index: 3, kind: input, shape index: {}]
  %s4 = inlined_call_operand.vmem [shape: f32[17,136], index: 4, kind: input, shape index: {}]
  %s5 = inlined_call_operand.vmem [shape: bf16[2,136,32], index: 5, kind: output, shape index: {0}]
  %s6 = inlined_call_operand.vmem [shape: f32[2,17,2], index: 6, kind: output, shape index: {1}]
  %7 = xla_tuple %s5, %s6
  %s8 = sld [smem:[#allocation0]]
  $region61: #{gcn_forward_pallas.2} parent=0
    _
  %s10 = ssub.s32 1, %s8
  %s11 = scalar_select 0, %s10, %s8
  loop: start=0, step=1, limit=4
  $region2: #{gcn_forward_pallas.2} parent=0 // loop_pre_header
    _
  $region3: #{gcn_forward_pallas.2} parent=0 // loop_header
    %s13 = sphi 0, %s17
    %p14 = scmp.ge.s32.totalorder %s13, 4
    %s23 = sphi 0, %s25
    %s26 = sphi 0, %s23
    %s27 = sphi 0, %s26
    %s43 = sphi 0, %s27
    %s47 = sphi 0, %s47
    %s49 = sphi 0, %s47
    %s50 = sphi 0, %s49
    %s64 = sphi 0, %s50
    %s68 = sphi 0, %s68
    %s70 = sphi 0, %s68
    %s71 = sphi 0, %s70
    %s85 = sphi 0, %s71
    %s89 = sphi 0, %s89
    %s91 = sphi 0, %s89
    %s92 = sphi 0, %s91
    %s106 = sphi 0, %s92
    %s110 = sphi 0, %s110
    %s112 = sphi 0, %s110
    %s113 = sphi 0, %s112
    %s127 = sphi 0, %s113
    %s133 = sphi 0, %s135
    %s136 = sphi 0, %s133
    %s137 = sphi 0, %s136
    %s153 = sphi 0, %s137
    %s159 = sphi 0, %s161
    %s162 = sphi 0, %s159
    %s163 = sphi 0, %s162
    %s179 = sphi 0, %s163
  $region4: #{gcn_forward_pallas.2} parent=0 // loop_header_branch
    %16 = sbr.rel (%p14) target = $region8
  $region5: #{gcn_forward_pallas.2} parent=0 // loop_body
    %s18 = ssub.s32 %s13, 1
    %s19 = ssub.s32 %s13, 2
    %s20 = sadd.s32 %s13, 1
    %s21 = ssub.s32 %s13, %s20
    %p22 = scmp.eq.s32.totalorder %s21, 0
    %s24 = sadd.s32 %s23, 1
    %s25 = scalar_select %p22, %s23, %s24
    %p28 = pneg %p22
    %p29 = scmp.eq.s32.totalorder %s13, 1
    %p30 = por %p28, %p29
    %p31 = scmp.ne.s32.totalorder %s23, %s26
    %p32 = scmp.eq.s32.totalorder %s13, 0
    %p33 = por %p31, %p32
    %p34 = scmp.ne.s32.totalorder %s23, %s26
    %p35 = scmp.eq.s32.totalorder %s18, 1
    %p36 = por %p34, %p35
    %p37 = scmp.ne.s32.totalorder %s26, %s27
    %p38 = scmp.eq.s32.totalorder %s18, 0
    %p39 = por %p37, %p38
    %p40 = scmp.ne.s32.totalorder %s26, %s27
    %p41 = scmp.eq.s32.totalorder %s19, 1
    %p42 = por %p40, %p41
    %p44 = scmp.ne.s32.totalorder %s27, %s43
    %p45 = scmp.eq.s32.totalorder %s19, 0
    %p46 = por %p44, %p45
    %s48 = sadd.s32 %s47, 1
    %p51 = scmp.eq.s32.totalorder %s13, 1
    %p52 = scmp.ne.s32.totalorder %s47, %s49
    %p53 = scmp.eq.s32.totalorder %s13, 0
    %p54 = por %p52, %p53
    %p55 = scmp.ne.s32.totalorder %s47, %s49
    %p56 = scmp.eq.s32.totalorder %s18, 1
    %p57 = por %p55, %p56
    %p58 = scmp.ne.s32.totalorder %s49, %s50
    %p59 = scmp.eq.s32.totalorder %s18, 0
    %p60 = por %p58, %p59
    %p61 = scmp.ne.s32.totalorder %s49, %s50
    %p62 = scmp.eq.s32.totalorder %s19, 1
    %p63 = por %p61, %p62
    %p65 = scmp.ne.s32.totalorder %s50, %s64
    %p66 = scmp.eq.s32.totalorder %s19, 0
    %p67 = por %p65, %p66
    %s69 = sadd.s32 %s68, 1
    %p72 = scmp.eq.s32.totalorder %s13, 1
    %p73 = scmp.ne.s32.totalorder %s68, %s70
    %p74 = scmp.eq.s32.totalorder %s13, 0
    %p75 = por %p73, %p74
    %p76 = scmp.ne.s32.totalorder %s68, %s70
    %p77 = scmp.eq.s32.totalorder %s18, 1
    %p78 = por %p76, %p77
    %p79 = scmp.ne.s32.totalorder %s70, %s71
    %p80 = scmp.eq.s32.totalorder %s18, 0
    %p81 = por %p79, %p80
    %p82 = scmp.ne.s32.totalorder %s70, %s71
    %p83 = scmp.eq.s32.totalorder %s19, 1
    %p84 = por %p82, %p83
    %p86 = scmp.ne.s32.totalorder %s71, %s85
    %p87 = scmp.eq.s32.totalorder %s19, 0
    %p88 = por %p86, %p87
    %s90 = sadd.s32 %s89, 1
    %p93 = scmp.eq.s32.totalorder %s13, 1
    %p94 = scmp.ne.s32.totalorder %s89, %s91
    %p95 = scmp.eq.s32.totalorder %s13, 0
    %p96 = por %p94, %p95
    %p97 = scmp.ne.s32.totalorder %s89, %s91
    %p98 = scmp.eq.s32.totalorder %s18, 1
    %p99 = por %p97, %p98
    %p100 = scmp.ne.s32.totalorder %s91, %s92
    %p101 = scmp.eq.s32.totalorder %s18, 0
    %p102 = por %p100, %p101
    %p103 = scmp.ne.s32.totalorder %s91, %s92
    %p104 = scmp.eq.s32.totalorder %s19, 1
    %p105 = por %p103, %p104
    %p107 = scmp.ne.s32.totalorder %s92, %s106
    %p108 = scmp.eq.s32.totalorder %s19, 0
    %p109 = por %p107, %p108
    %s111 = sadd.s32 %s110, 1
    %p114 = scmp.eq.s32.totalorder %s13, 1
    %p115 = scmp.ne.s32.totalorder %s110, %s112
    %p116 = scmp.eq.s32.totalorder %s13, 0
    %p117 = por %p115, %p116
    %p118 = scmp.ne.s32.totalorder %s110, %s112
    %p119 = scmp.eq.s32.totalorder %s18, 1
    %p120 = por %p118, %p119
    %p121 = scmp.ne.s32.totalorder %s112, %s113
    %p122 = scmp.eq.s32.totalorder %s18, 0
    %p123 = por %p121, %p122
    %p124 = scmp.ne.s32.totalorder %s112, %s113
    %p125 = scmp.eq.s32.totalorder %s19, 1
    %p126 = por %p124, %p125
    %p128 = scmp.ne.s32.totalorder %s113, %s127
    %p129 = scmp.eq.s32.totalorder %s19, 0
    %p130 = por %p128, %p129
    %s131 = ssub.s32 %s13, %s20
    %p132 = scmp.eq.s32.totalorder %s131, 0
    %s134 = sadd.s32 %s133, 1
    %s135 = scalar_select %p132, %s133, %s134
    %p138 = pneg %p132
    %p139 = scmp.eq.s32.totalorder %s13, 1
    %p140 = por %p138, %p139
    %p141 = scmp.ne.s32.totalorder %s133, %s136
    %p142 = scmp.eq.s32.totalorder %s13, 0
    %p143 = por %p141, %p142
    %p144 = scmp.ne.s32.totalorder %s133, %s136
    %p145 = scmp.eq.s32.totalorder %s18, 1
    %p146 = por %p144, %p145
    %p147 = scmp.ne.s32.totalorder %s136, %s137
    %p148 = scmp.eq.s32.totalorder %s18, 0
    %p149 = por %p147, %p148
    %p150 = scmp.ne.s32.totalorder %s136, %s137
    %p151 = scmp.eq.s32.totalorder %s19, 1
    %p152 = por %p150, %p151
    %p154 = scmp.ne.s32.totalorder %s137, %s153
    %p155 = scmp.eq.s32.totalorder %s19, 0
    %p156 = por %p154, %p155
    %s157 = ssub.s32 %s13, %s20
    %p158 = scmp.eq.s32.totalorder %s157, 0
    %s160 = sadd.s32 %s159, 1
    %s161 = scalar_select %p158, %s159, %s160
    %p164 = pneg %p158
    %p165 = scmp.eq.s32.totalorder %s13, 1
    %p166 = por %p164, %p165
    %p167 = scmp.ne.s32.totalorder %s159, %s162
    %p168 = scmp.eq.s32.totalorder %s13, 0
    %p169 = por %p167, %p168
    %p170 = scmp.ne.s32.totalorder %s159, %s162
    %p171 = scmp.eq.s32.totalorder %s18, 1
    %p172 = por %p170, %p171
    %p173 = scmp.ne.s32.totalorder %s162, %s163
    %p174 = scmp.eq.s32.totalorder %s18, 0
    %p175 = por %p173, %p174
    %p176 = scmp.ne.s32.totalorder %s162, %s163
    %p177 = scmp.eq.s32.totalorder %s19, 1
    %p178 = por %p176, %p177
    %p180 = scmp.ne.s32.totalorder %s163, %s179
    %p181 = scmp.eq.s32.totalorder %s19, 0
    %p182 = por %p180, %p181
    %p183 = scmp.le.s32.totalorder 1, %s13
    %p184 = scmp.lt.s32.totalorder %s13, 3
    %p185 = pnand %p183, %p184
    %p186 = pneg %p185
    // Predicated region
    $region9: #{gcn_forward_pallas.2} parent=5 // pred_check
      _
    $region10: #{gcn_forward_pallas.2} parent=5 // pred_check_branch
      %188 = sbr.rel (%p185) target = $region12
    $region11: #{gcn_forward_pallas.2} parent=5 // pred_region
      %s189 = ssub.s32 %s13, 1
      // Predicated region
      $region13: #{gcn_forward_pallas.2} parent=11 // pred_check
        %p190 = pneg %p60
      $region14: #{gcn_forward_pallas.2} parent=11 // pred_check_branch
        %192 = sbr.rel (%p190) target = $region16
      $region15: #{gcn_forward_pallas.2} parent=11 // pred_region
        _
      $region16: #{gcn_forward_pallas.2} parent=11 // pred_fallthru
        _
      // Predicated region
      $region17: #{gcn_forward_pallas.2} parent=11 // pred_check
        %p193 = pneg %p81
      $region18: #{gcn_forward_pallas.2} parent=11 // pred_check_branch
        %195 = sbr.rel (%p193) target = $region20
      $region19: #{gcn_forward_pallas.2} parent=11 // pred_region
        _
      $region20: #{gcn_forward_pallas.2} parent=11 // pred_fallthru
        _
      // Predicated region
      $region21: #{gcn_forward_pallas.2} parent=11 // pred_check
        %p196 = pneg %p102
      $region22: #{gcn_forward_pallas.2} parent=11 // pred_check_branch
        %198 = sbr.rel (%p196) target = $region24
      $region23: #{gcn_forward_pallas.2} parent=11 // pred_region
        _
      $region24: #{gcn_forward_pallas.2} parent=11 // pred_fallthru
        _
      // Predicated region
      $region25: #{gcn_forward_pallas.2} parent=11 // pred_check
        %p199 = pneg %p123
      $region26: #{gcn_forward_pallas.2} parent=11 // pred_check_branch
        %201 = sbr.rel (%p199) target = $region28
      $region27: #{gcn_forward_pallas.2} parent=11 // pred_region
        _
      $region28: #{gcn_forward_pallas.2} parent=11 // pred_fallthru
        _
    $region12: #{gcn_forward_pallas.2} parent=5 // pred_fallthru
      _
    %p202 = scmp.lt.s32.totalorder %s13, 2
    // Predicated region
    $region29: #{gcn_forward_pallas.2} parent=5 // pred_check
      %p203 = pneg %p202
    $region30: #{gcn_forward_pallas.2} parent=5 // pred_check_branch
      %205 = sbr.rel (%p203) target = $region32
    $region31: #{gcn_forward_pallas.2} parent=5 // pred_region
      // Predicated region
      $region33: #{gcn_forward_pallas.2} parent=31 // pred_check
        %p206 = pneg %p33
      $region34: #{gcn_forward_pallas.2} parent=31 // pred_check_branch
        %208 = sbr.rel (%p206) target = $region36
      $region35: #{gcn_forward_pallas.2} parent=31 // pred_region
        %p209 = scmp.lt.s32.totalorder %s13, 1
        %s210 = scalar_select %p209, %s13, 1
        %s211 = smul.addr %s210, 17
        %s212 = smul.addr %s211, 8
        %s213 = scalar_lea.vmem %s0, %s212
      $region36: #{gcn_forward_pallas.2} parent=31 // pred_fallthru
        _
    $region32: #{gcn_forward_pallas.2} parent=5 // pred_fallthru
      _
    %p214 = scmp.le.s32.totalorder 1, %s13
    %p215 = scmp.lt.s32.totalorder %s13, 3
    %p216 = pnand %p214, %p215
    %p217 = pneg %p216
    // Predicated region
    $region37: #{gcn_forward_pallas.2} parent=5 // pred_check
      _
    $region38: #{gcn_forward_pallas.2} parent=5 // pred_check_branch
      %219 = sbr.rel (%p216) target = $region40
    $region39: #{gcn_forward_pallas.2} parent=5 // pred_region
      %s220 = ssub.s32 %s13, 1
      %p221 = scmp.lt.s32.totalorder %s18, 1
      %s222 = scalar_select %p221, %s18, 1
      %s223 = smul.addr %s222, 17
      %s224 = smul.addr %s223, 8
      %s225 = scalar_lea.vmem %s0, %s224
      %p226 = pneg %p39
      %p227 = pneg %p36
      %p228 = pneg %p60
      %p229 = pneg %p57
      %p230 = pneg %p81
      %p231 = pneg %p78
      %p232 = pneg %p102
      %p233 = pneg %p99
      %p234 = pneg %p123
      %p235 = pneg %p120
      %p236 = pneg %p149
      %p237 = pneg %p146
      %p238 = scmp.lt.s32.totalorder %s18, 1
      %s239 = scalar_select %p238, %s18, 1
      %s240 = smul.addr %s239, 17
      %s241 = smul.addr %s240, 4
      %s242 = scalar_lea.vmem %s5, %s241
      %p243 = pneg %p175
      %p244 = pneg %p172
      %p245 = scmp.lt.s32.totalorder %s18, 1
      %s246 = scalar_select %p245, %s18, 1
      %s247 = smul.addr %s246, 3
      %s248 = smul.addr %s247, 8
      %s249 = scalar_lea.vmem %s6, %s248
      %p250 = scmp.lt.s32.totalorder %s18, 1
      %s251 = scalar_select %p250, %s18, 1
      %s252 = smul.addr %s251, 17
      %s253 = smul.addr %s252, 8
      %s254 = scalar_lea.vmem %s0, %s253
      %p255 = scmp.lt.s32.totalorder %s18, 1
      %s256 = scalar_select %p255, %s18, 1
      %s257 = smul.addr %s256, 17
      %s258 = smul.addr %s257, 4
      %s259 = scalar_lea.vmem %s5, %s258
      %p260 = scmp.lt.s32.totalorder %s18, 1
      %s261 = scalar_select %p260, %s18, 1
      %s262 = smul.addr %s261, 3
      %s263 = smul.addr %s262, 8
      %s264 = scalar_lea.vmem %s6, %s263
      %v265 = vld [vmem:[%s1] sm:$0xff]
      %v266 = vld [vmem:[%s1 + $0x8] sm:$0xff]
      %v267 = vld [vmem:[%s1 + $0x10] sm:$0xff]
      %v268 = vld [vmem:[%s1 + $0x18] sm:$0xff]
      %v269 = vld [vmem:[%s2] sm:$0x1]
      %v270 = vld [vmem:[%s3] sm:$0xff]
      %v271 = vld [vmem:[%s3 + $0x8] sm:$0xff]
      %v272 = vld [vmem:[%s3 + $0x10] sm:$0xff]
      %v273 = vld [vmem:[%s3 + $0x18] sm:$0xff]
      %v274 = vld [vmem:[%s3 + $0x20] sm:$0xff]
      %v275 = vld [vmem:[%s3 + $0x28] sm:$0xff]
      %v276 = vld [vmem:[%s3 + $0x30] sm:$0xff]
      %v277 = vld [vmem:[%s3 + $0x38] sm:$0xff]
      %v278 = vld [vmem:[%s3 + $0x40] sm:$0xff]
      %v279 = vld [vmem:[%s3 + $0x48] sm:$0xff]
      %v280 = vld [vmem:[%s3 + $0x50] sm:$0xff]
      %v281 = vld [vmem:[%s3 + $0x58] sm:$0xff]
      %v282 = vld [vmem:[%s3 + $0x60] sm:$0xff]
      %v283 = vld [vmem:[%s3 + $0x68] sm:$0xff]
      %v284 = vld [vmem:[%s3 + $0x70] sm:$0xff]
      %v285 = vld [vmem:[%s3 + $0x78] sm:$0xff]
      %v286 = vld [vmem:[%s3 + $0x80] sm:$0xff]
      %v287 = vld [vmem:[%s3 + $0x88] sm:$0xff]
      %v288 = vld [vmem:[%s3 + $0x90] sm:$0xff]
      %v289 = vld [vmem:[%s3 + $0x98] sm:$0xff]
      %v290 = vld [vmem:[%s3 + $0xa0] sm:$0xff]
      %v291 = vld [vmem:[%s3 + $0xa8] sm:$0xff]
      %v292 = vld [vmem:[%s3 + $0xb0] sm:$0xff]
      %v293 = vld [vmem:[%s3 + $0xb8] sm:$0xff]
      %v294 = vld [vmem:[%s3 + $0xc0] sm:$0xff]
      %v295 = vld [vmem:[%s3 + $0xc8] sm:$0xff]
      %v296 = vld [vmem:[%s3 + $0xd0] sm:$0xff]
      %v297 = vld [vmem:[%s3 + $0xd8] sm:$0xff]
      %v298 = vld [vmem:[%s3 + $0xe0] sm:$0xff]
      %v299 = vld [vmem:[%s3 + $0xe8] sm:$0xff]
      %v300 = vld [vmem:[%s3 + $0xf0] sm:$0xff]
      %v301 = vld [vmem:[%s3 + $0xf8] sm:$0xff]
      %v302 = vld [vmem:[%s3 + $0x100] sm:$0xff]
      %v303 = vld [vmem:[%s3 + $0x108] sm:$0xff]
      %v304 = vld [vmem:[%s4] sm:$0xff]
      %v305 = vld [vmem:[%s4 + $0x8] sm:$0xff]
      %v306 = vld [vmem:[%s4 + $0x10] sm:$0xff]
      %v307 = vld [vmem:[%s4 + $0x18] sm:$0xff]
      %v308 = vld [vmem:[%s4 + $0x20] sm:$0x1]
      %v309 = vld [vmem:[%s4 + $0x28] sm:$0x1]
      %v310 = vld [vmem:[%s254] sm:$0xff]
      %v311 = vld [vmem:[%s254 + $0x8] sm:$0xff]
      %v312 = vld [vmem:[%s254 + $0x10] sm:$0xff]
      %v313 = vld [vmem:[%s254 + $0x18] sm:$0xff]
      %v314 = vld [vmem:[%s254 + $0x20] sm:$0xff]
      %v315 = vld [vmem:[%s254 + $0x28] sm:$0xff]
      %v316 = vld [vmem:[%s254 + $0x30] sm:$0xff]
      %v317 = vld [vmem:[%s254 + $0x38] sm:$0xff]
      %v318 = vld [vmem:[%s254 + $0x40] sm:$0xff]
      %v319 = vld [vmem:[%s254 + $0x48] sm:$0xff]
      %v320 = vld [vmem:[%s254 + $0x50] sm:$0xff]
      %v321 = vld [vmem:[%s254 + $0x58] sm:$0xff]
      %v322 = vld [vmem:[%s254 + $0x60] sm:$0xff]
      %v323 = vld [vmem:[%s254 + $0x68] sm:$0xff]
      %v324 = vld [vmem:[%s254 + $0x70] sm:$0xff]
      %v325 = vld [vmem:[%s254 + $0x78] sm:$0xff]
      %v326 = vld [vmem:[%s254 + $0x80] sm:$0xff]
      %v328 = vlaneseq
      %v329 = vshrl.u32 %v328, 7
      %v330 = vsub.s32 0, %v329
      %v331 = vrot.slane %v269, %v330
      %vm333 = vcmask 261120
      %v335 = vsel %vm333, %v310, 0
      %v338 = vsel %vm333, %v311, 0
      %v341 = vsel %vm333, %v312, 0
      %v344 = vsel %vm333, %v313, 0
      %v347 = vsel %vm333, %v314, 0
      %v350 = vsel %vm333, %v315, 0
      %v353 = vsel %vm333, %v316, 0
      %v356 = vsel %vm333, %v317, 0
      %v359 = vsel %vm333, %v318, 0
      %v362 = vsel %vm333, %v319, 0
      %v365 = vsel %vm333, %v320, 0
      %v368 = vsel %vm333, %v321, 0
      %v371 = vsel %vm333, %v322, 0
      %v374 = vsel %vm333, %v323, 0
      %v377 = vsel %vm333, %v324, 0
      %v380 = vsel %vm333, %v325, 0
      %v383 = vsel %vm333, %v326, 0
      %385 = vmatprep.subr.mxu0 0.0
      %386 = vmatpush1.msra.mxu0 0.0
      %387 = vmatprep.subr.mxu0 0.0
      %388 = vmatpush1.msra.mxu0 0.0
      %389 = vmatprep.subr.mxu0 0.0
      %390 = vmatpush1.msra.mxu0 0.0
      %391 = vmatprep.subr.mxu0 0.0
      %392 = vmatpush1.msra.mxu0 0.0
      %393 = vmatprep.subr.mxu0 0.0
      %394 = vmatpush1.msra.mxu0 0.0
      %395 = vmatprep.subr.mxu0 0.0
      %396 = vmatpush1.msra.mxu0 0.0
      %397 = vmatprep.subr.mxu0 0.0
      %398 = vmatpush1.msra.mxu0 0.0
      %399 = vmatprep.subr.mxu0 0.0
      %400 = vmatpush1.msra.mxu0 0.0
      %401 = vmatprep.subr.mxu0 0.0
      %402 = vmatpush1.msra.mxu0 0.0
      %403 = vmatprep.subr.mxu0 0.0
      %404 = vmatpush1.msra.mxu0 0.0
      %405 = vmatprep.subr.mxu0 0.0
      %406 = vmatpush1.msra.mxu0 0.0
      %407 = vmatprep.subr.mxu0 0.0
      %408 = vmatpush1.msra.mxu0 0.0
      %409 = vmatprep.subr.mxu0 0.0
      %410 = vmatpush1.msra.mxu0 %v268
      %411 = vmatprep.subr.mxu0 0.0
      %412 = vmatpush1.msra.mxu0 %v267
      %413 = vmatprep.subr.mxu0 0.0
      %414 = vmatpush1.msra.mxu0 %v266
      %415 = vmatprep.subr.mxu0 0.0
      %416 = vmatpush1.msra.mxu0 %v265
      %417 = vmatprep.subr.mxu0 0.0
      %418 = vmatpush2.msra.mxu0 0.0
      %419 = vmatprep.subr.mxu0 0.0
      %420 = vmatpush2.msra.mxu0 0.0
      %421 = vmatprep.subr.mxu0 0.0
      %422 = vmatpush2.msra.mxu0 0.0
      %423 = vmatprep.subr.mxu0 0.0
      %424 = vmatpush2.msra.mxu0 0.0
      %425 = vmatprep.subr.mxu0 0.0
      %426 = vmatpush2.msra.mxu0 0.0
      %427 = vmatprep.subr.mxu0 0.0
      %428 = vmatpush2.msra.mxu0 0.0
      %429 = vmatprep.subr.mxu0 0.0
      %430 = vmatpush2.msra.mxu0 0.0
      %431 = vmatprep.subr.mxu0 0.0
      %432 = vmatpush2.msra.mxu0 0.0
      %433 = vmatprep.subr.mxu0 0.0
      %434 = vmatpush2.msra.mxu0 0.0
      %435 = vmatprep.subr.mxu0 0.0
      %436 = vmatpush2.msra.mxu0 0.0
      %437 = vmatprep.subr.mxu0 0.0
      %438 = vmatpush2.msra.mxu0 0.0
      %439 = vmatprep.subr.mxu0 0.0
      %440 = vmatpush2.msra.mxu0 0.0
      %441 = vmatprep.subr.mxu0 0.0
      %442 = vmatpush2.msra.mxu0 0.0
      %443 = vmatprep.subr.mxu0 0.0
      %444 = vmatpush2.msra.mxu0 0.0
      %445 = vmatprep.subr.mxu0 0.0
      %446 = vmatpush2.msra.mxu0 0.0
      %447 = vmatprep.subr.mxu0 0.0
      %448 = vmatpush2.msra.mxu0 0.0
      %449 = vmatprep.mubr.f32.mxu0 0.0
      %450 = vmatmul.mubr.f32.gmra.mxu0 %v335
      %v451 = vpop.f32.mrf.mxu0
      %v452 = vadd.f32 %v331, %v451
      %v453 = vpop.f32.mrf.mxu0
      %454 = vmatprep.mubr.f32.mxu0 0.0
      %455 = vmatmul.mubr.f32.gmra.mxu0 %v338
      %v456 = vpop.f32.mrf.mxu0
      %v457 = vadd.f32 %v331, %v456
      %v458 = vpop.f32.mrf.mxu0
      %459 = vmatprep.mubr.f32.mxu0 0.0
      %460 = vmatmul.mubr.f32.gmra.mxu0 %v341
      %v461 = vpop.f32.mrf.mxu0
      %v462 = vadd.f32 %v331, %v461
      %v463 = vpop.f32.mrf.mxu0
      %464 = vmatprep.mubr.f32.mxu0 0.0
      %465 = vmatmul.mubr.f32.gmra.mxu0 %v344
      %v466 = vpop.f32.mrf.mxu0
      %v467 = vadd.f32 %v331, %v466
      %v468 = vpop.f32.mrf.mxu0
      %469 = vmatprep.mubr.f32.mxu0 0.0
      %470 = vmatmul.mubr.f32.gmra.mxu0 %v347
      %v471 = vpop.f32.mrf.mxu0
      %v472 = vadd.f32 %v331, %v471
      %v473 = vpop.f32.mrf.mxu0
      %474 = vmatprep.mubr.f32.mxu0 0.0
      %475 = vmatmul.mubr.f32.gmra.mxu0 %v350
      %v476 = vpop.f32.mrf.mxu0
      %v477 = vadd.f32 %v331, %v476
      %v478 = vpop.f32.mrf.mxu0
      %479 = vmatprep.mubr.f32.mxu0 0.0
      %480 = vmatmul.mubr.f32.gmra.mxu0 %v353
      %v481 = vpop.f32.mrf.mxu0
      %v482 = vadd.f32 %v331, %v481
      %v483 = vpop.f32.mrf.mxu0
      %484 = vmatprep.mubr.f32.mxu0 0.0
      %485 = vmatmul.mubr.f32.gmra.mxu0 %v356
      %v486 = vpop.f32.mrf.mxu0
      %v487 = vadd.f32 %v331, %v486
      %v488 = vpop.f32.mrf.mxu0
      %489 = vmatprep.mubr.f32.mxu0 0.0
      %490 = vmatmul.mubr.f32.gmra.mxu0 %v359
      %v491 = vpop.f32.mrf.mxu0
      %v492 = vadd.f32 %v331, %v491
      %v493 = vpop.f32.mrf.mxu0
      %494 = vmatprep.mubr.f32.mxu0 0.0
      %495 = vmatmul.mubr.f32.gmra.mxu0 %v362
      %v496 = vpop.f32.mrf.mxu0
      %v497 = vadd.f32 %v331, %v496
      %v498 = vpop.f32.mrf.mxu0
      %499 = vmatprep.mubr.f32.mxu0 0.0
      %500 = vmatmul.mubr.f32.gmra.mxu0 %v365
      %v501 = vpop.f32.mrf.mxu0
      %v502 = vadd.f32 %v331, %v501
      %v503 = vpop.f32.mrf.mxu0
      %504 = vmatprep.mubr.f32.mxu0 0.0
      %505 = vmatmul.mubr.f32.gmra.mxu0 %v368
      %v506 = vpop.f32.mrf.mxu0
      %v507 = vadd.f32 %v331, %v506
      %v508 = vpop.f32.mrf.mxu0
      %509 = vmatprep.mubr.f32.mxu0 0.0
      %510 = vmatmul.mubr.f32.gmra.mxu0 %v371
      %v511 = vpop.f32.mrf.mxu0
      %v512 = vadd.f32 %v331, %v511
      %v513 = vpop.f32.mrf.mxu0
      %514 = vmatprep.mubr.f32.mxu0 0.0
      %515 = vmatmul.mubr.f32.gmra.mxu0 %v374
      %v516 = vpop.f32.mrf.mxu0
      %v517 = vadd.f32 %v331, %v516
      %v518 = vpop.f32.mrf.mxu0
      %519 = vmatprep.mubr.f32.mxu0 0.0
      %520 = vmatmul.mubr.f32.gmra.mxu0 %v377
      %v521 = vpop.f32.mrf.mxu0
      %v522 = vadd.f32 %v331, %v521
      %v523 = vpop.f32.mrf.mxu0
      %524 = vmatprep.mubr.f32.mxu0 0.0
      %525 = vmatmul.mubr.f32.gmra.mxu0 %v380
      %v526 = vpop.f32.mrf.mxu0
      %v527 = vadd.f32 %v331, %v526
      %v528 = vpop.f32.mrf.mxu0
      %529 = vmatprep.mubr.f32.mxu0 0.0
      %530 = vmatmul.mubr.f32.gmra.mxu0 %v383
      %v531 = vpop.f32.mrf.mxu0
      %v532 = vadd.f32 %v331, %v531
      %v533 = vpop.f32.mrf.mxu0
      %534 = vdwg.mxu0
      %552 = vrot.lane.b32.xlu0 %v452, 96
      %v553 = vpop.permute.xlu0 %552
      %554 = vrot.lane.b32.xlu0 %v457, 96
      %v555 = vpop.permute.xlu0 %554
      %556 = vrot.lane.b32.xlu0 %v462, 96
      %v557 = vpop.permute.xlu0 %556
      %558 = vrot.lane.b32.xlu0 %v467, 96
      %v559 = vpop.permute.xlu0 %558
      %560 = vrot.lane.b32.xlu0 %v472, 96
      %v561 = vpop.permute.xlu0 %560
      %562 = vrot.lane.b32.xlu0 %v477, 96
      %v563 = vpop.permute.xlu0 %562
      %564 = vrot.lane.b32.xlu0 %v482, 96
      %v565 = vpop.permute.xlu0 %564
      %566 = vrot.lane.b32.xlu0 %v487, 96
      %v567 = vpop.permute.xlu0 %566
      %568 = vrot.lane.b32.xlu0 %v492, 96
      %v569 = vpop.permute.xlu0 %568
      %570 = vrot.lane.b32.xlu0 %v497, 96
      %v571 = vpop.permute.xlu0 %570
      %572 = vrot.lane.b32.xlu0 %v502, 96
      %v573 = vpop.permute.xlu0 %572
      %574 = vrot.lane.b32.xlu0 %v507, 96
      %v575 = vpop.permute.xlu0 %574
      %576 = vrot.lane.b32.xlu0 %v512, 96
      %v577 = vpop.permute.xlu0 %576
      %578 = vrot.lane.b32.xlu0 %v517, 96
      %v579 = vpop.permute.xlu0 %578
      %580 = vrot.lane.b32.xlu0 %v522, 96
      %v581 = vpop.permute.xlu0 %580
      %582 = vrot.lane.b32.xlu0 %v527, 96
      %v583 = vpop.permute.xlu0 %582
      %584 = vrot.lane.b32.xlu0 %v532, 96
      %v585 = vpop.permute.xlu0 %584
      %vm603 = vcmask 64512
      %v605 = vsel %vm603, %v271, 0
      %v608 = vsel %vm603, %v273, 0
      %v611 = vsel %vm603, %v275, 0
      %v614 = vsel %vm603, %v277, 0
      %v617 = vsel %vm603, %v279, 0
      %v620 = vsel %vm603, %v281, 0
      %v623 = vsel %vm603, %v283, 0
      %v626 = vsel %vm603, %v285, 0
      %v629 = vsel %vm603, %v287, 0
      %v632 = vsel %vm603, %v289, 0
      %v635 = vsel %vm603, %v291, 0
      %v638 = vsel %vm603, %v293, 0
      %v641 = vsel %vm603, %v295, 0
      %v644 = vsel %vm603, %v297, 0
      %v647 = vsel %vm603, %v299, 0
      %v650 = vsel %vm603, %v301, 0
      %v653 = vsel %vm603, %v303, 0
      %655 = vmatprep.subr.mxu0 0.0
      %656 = vmatpush1.msra.mxu0 %v527
      %657 = vmatprep.subr.mxu0 0.0
      %658 = vmatpush1.msra.mxu0 %v522
      %659 = vmatprep.subr.mxu0 0.0
      %660 = vmatpush1.msra.mxu0 %v517
      %661 = vmatprep.subr.mxu0 0.0
      %662 = vmatpush1.msra.mxu0 %v512
      %663 = vmatprep.subr.mxu0 0.0
      %664 = vmatpush1.msra.mxu0 %v507
      %665 = vmatprep.subr.mxu0 0.0
      %666 = vmatpush1.msra.mxu0 %v502
      %667 = vmatprep.subr.mxu0 0.0
      %668 = vmatpush1.msra.mxu0 %v497
      %669 = vmatprep.subr.mxu0 0.0
      %670 = vmatpush1.msra.mxu0 %v492
      %671 = vmatprep.subr.mxu0 0.0
      %672 = vmatpush1.msra.mxu0 %v487
      %673 = vmatprep.subr.mxu0 0.0
      %674 = vmatpush1.msra.mxu0 %v482
      %675 = vmatprep.subr.mxu0 0.0
      %676 = vmatpush1.msra.mxu0 %v477
      %677 = vmatprep.subr.mxu0 0.0
      %678 = vmatpush1.msra.mxu0 %v472
      %679 = vmatprep.subr.mxu0 0.0
      %680 = vmatpush1.msra.mxu0 %v467
      %681 = vmatprep.subr.mxu0 0.0
      %682 = vmatpush1.msra.mxu0 %v462
      %683 = vmatprep.subr.mxu0 0.0
      %684 = vmatpush1.msra.mxu0 %v457
      %685 = vmatprep.subr.mxu0 0.0
      %686 = vmatpush1.msra.mxu0 %v452
      %687 = vmatprep.subr.mxu0 0.0
      %688 = vmatpush2.msra.mxu0 0.0
      %689 = vmatprep.subr.mxu0 0.0
      %690 = vmatpush2.msra.mxu0 0.0
      %691 = vmatprep.subr.mxu0 0.0
      %692 = vmatpush2.msra.mxu0 0.0
      %693 = vmatprep.subr.mxu0 0.0
      %694 = vmatpush2.msra.mxu0 0.0
      %695 = vmatprep.subr.mxu0 0.0
      %696 = vmatpush2.msra.mxu0 0.0
      %697 = vmatprep.subr.mxu0 0.0
      %698 = vmatpush2.msra.mxu0 0.0
      %699 = vmatprep.subr.mxu0 0.0
      %700 = vmatpush2.msra.mxu0 0.0
      %701 = vmatprep.subr.mxu0 0.0
      %702 = vmatpush2.msra.mxu0 0.0
      %703 = vmatprep.subr.mxu0 0.0
      %704 = vmatpush2.msra.mxu0 0.0
      %705 = vmatprep.subr.mxu0 0.0
      %706 = vmatpush2.msra.mxu0 0.0
      %707 = vmatprep.subr.mxu0 0.0
      %708 = vmatpush2.msra.mxu0 0.0
      %709 = vmatprep.subr.mxu0 0.0
      %710 = vmatpush2.msra.mxu0 0.0
      %711 = vmatprep.subr.mxu0 0.0
      %712 = vmatpush2.msra.mxu0 0.0
      %713 = vmatprep.subr.mxu0 0.0
      %714 = vmatpush2.msra.mxu0 0.0
      %715 = vmatprep.subr.mxu0 0.0
      %716 = vmatpush2.msra.mxu0 0.0
      %717 = vmatprep.subr.mxu0 0.0
      %718 = vmatpush2.msra.mxu0 %v532
      %719 = vmatprep.mubr.f32.mxu0 %v605
      %720 = vmatmul.mubr.f32.gmra.mxu0 %v270
      %v721 = vpop.f32.mrf.mxu0
      %v722 = vadd.f32 %v553, %v721
      %v723 = vpop.f32.mrf.mxu0
      %724 = vmatprep.mubr.f32.mxu0 %v608
      %725 = vmatmul.mubr.f32.gmra.mxu0 %v272
      %v726 = vpop.f32.mrf.mxu0
      %v727 = vadd.f32 %v555, %v726
      %v728 = vpop.f32.mrf.mxu0
      %729 = vmatprep.mubr.f32.mxu0 %v611
      %730 = vmatmul.mubr.f32.gmra.mxu0 %v274
      %v731 = vpop.f32.mrf.mxu0
      %v732 = vadd.f32 %v557, %v731
      %v733 = vpop.f32.mrf.mxu0
      %734 = vmatprep.mubr.f32.mxu0 %v614
      %735 = vmatmul.mubr.f32.gmra.mxu0 %v276
      %v736 = vpop.f32.mrf.mxu0
      %v737 = vadd.f32 %v559, %v736
      %v738 = vpop.f32.mrf.mxu0
      %739 = vmatprep.mubr.f32.mxu0 %v617
      %740 = vmatmul.mubr.f32.gmra.mxu0 %v278
      %v741 = vpop.f32.mrf.mxu0
      %v742 = vadd.f32 %v561, %v741
      %v743 = vpop.f32.mrf.mxu0
      %744 = vmatprep.mubr.f32.mxu0 %v620
      %745 = vmatmul.mubr.f32.gmra.mxu0 %v280
      %v746 = vpop.f32.mrf.mxu0
      %v747 = vadd.f32 %v563, %v746
      %v748 = vpop.f32.mrf.mxu0
      %749 = vmatprep.mubr.f32.mxu0 %v623
      %750 = vmatmul.mubr.f32.gmra.mxu0 %v282
      %v751 = vpop.f32.mrf.mxu0
      %v752 = vadd.f32 %v565, %v751
      %v753 = vpop.f32.mrf.mxu0
      %754 = vmatprep.mubr.f32.mxu0 %v626
      %755 = vmatmul.mubr.f32.gmra.mxu0 %v284
      %v756 = vpop.f32.mrf.mxu0
      %v757 = vadd.f32 %v567, %v756
      %v758 = vpop.f32.mrf.mxu0
      %759 = vmatprep.mubr.f32.mxu0 %v629
      %760 = vmatmul.mubr.f32.gmra.mxu0 %v286
      %v761 = vpop.f32.mrf.mxu0
      %v762 = vadd.f32 %v569, %v761
      %v763 = vpop.f32.mrf.mxu0
      %764 = vmatprep.mubr.f32.mxu0 %v632
      %765 = vmatmul.mubr.f32.gmra.mxu0 %v288
      %v766 = vpop.f32.mrf.mxu0
      %v767 = vadd.f32 %v571, %v766
      %v768 = vpop.f32.mrf.mxu0
      %769 = vmatprep.mubr.f32.mxu0 %v635
      %770 = vmatmul.mubr.f32.gmra.mxu0 %v290
      %v771 = vpop.f32.mrf.mxu0
      %v772 = vadd.f32 %v573, %v771
      %v773 = vpop.f32.mrf.mxu0
      %774 = vmatprep.mubr.f32.mxu0 %v638
      %775 = vmatmul.mubr.f32.gmra.mxu0 %v292
      %v776 = vpop.f32.mrf.mxu0
      %v777 = vadd.f32 %v575, %v776
      %v778 = vpop.f32.mrf.mxu0
      %779 = vmatprep.mubr.f32.mxu0 %v641
      %780 = vmatmul.mubr.f32.gmra.mxu0 %v294
      %v781 = vpop.f32.mrf.mxu0
      %v782 = vadd.f32 %v577, %v781
      %v783 = vpop.f32.mrf.mxu0
      %784 = vmatprep.mubr.f32.mxu0 %v644
      %785 = vmatmul.mubr.f32.gmra.mxu0 %v296
      %v786 = vpop.f32.mrf.mxu0
      %v787 = vadd.f32 %v579, %v786
      %v788 = vpop.f32.mrf.mxu0
      %789 = vmatprep.mubr.f32.mxu0 %v647
      %790 = vmatmul.mubr.f32.gmra.mxu0 %v298
      %v791 = vpop.f32.mrf.mxu0
      %v792 = vadd.f32 %v581, %v791
      %v793 = vpop.f32.mrf.mxu0
      %794 = vmatprep.mubr.f32.mxu0 %v650
      %795 = vmatmul.mubr.f32.gmra.mxu0 %v300
      %v796 = vpop.f32.mrf.mxu0
      %v797 = vadd.f32 %v583, %v796
      %v798 = vpop.f32.mrf.mxu0
      %799 = vmatprep.mubr.f32.mxu0 %v653
      %800 = vmatmul.mubr.f32.gmra.mxu0 %v302
      %v801 = vpop.f32.mrf.mxu0
      %v802 = vadd.f32 %v585, %v801
      %v803 = vpop.f32.mrf.mxu0
      %804 = vdwg.mxu0
      %v805 = vpack.c.bf16 %v727, %v722
      %v806 = vpack.c.bf16 %v737, %v732
      %v807 = vpack.c.bf16 %v747, %v742
      %v808 = vpack.c.bf16 %v757, %v752
      %v809 = vpack.c.bf16 %v767, %v762
      %v810 = vpack.c.bf16 %v777, %v772
      %v811 = vpack.c.bf16 %v787, %v782
      %v812 = vpack.c.bf16 %v797, %v792
      %v813 = vpack.c.bf16 %v802, %v802
      %v823 = vunpack.c.l.b16 %v805
      %v824 = vunpack.c.h.b16 %v805
      %v825 = vunpack.c.l.b16 %v806
      %v826 = vunpack.c.h.b16 %v806
      %v827 = vunpack.c.l.b16 %v807
      %v828 = vunpack.c.h.b16 %v807
      %v829 = vunpack.c.l.b16 %v808
      %v830 = vunpack.c.h.b16 %v808
      %v831 = vunpack.c.l.b16 %v809
      %v832 = vunpack.c.h.b16 %v809
      %v833 = vunpack.c.l.b16 %v810
      %v834 = vunpack.c.h.b16 %v810
      %v835 = vunpack.c.l.b16 %v811
      %v836 = vunpack.c.h.b16 %v811
      %v837 = vunpack.c.l.b16 %v812
      %v838 = vunpack.c.h.b16 %v812
      %v839 = vunpack.c.l.b16 %v813
      %v840 = vpack.c.b16 %v823, %v823
      %v841 = vpack.c.b16 %v824, %v824
      %v842 = vpack.c.b16 %v825, %v825
      %v843 = vpack.c.b16 %v826, %v826
      %v844 = vpack.c.b16 %v827, %v827
      %v845 = vpack.c.b16 %v828, %v828
      %v846 = vpack.c.b16 %v829, %v829
      %v847 = vpack.c.b16 %v830, %v830
      %v848 = vpack.c.b16 %v831, %v831
      %v849 = vpack.c.b16 %v832, %v832
      %v850 = vpack.c.b16 %v833, %v833
      %v851 = vpack.c.b16 %v834, %v834
      %v852 = vpack.c.b16 %v835, %v835
      %v853 = vpack.c.b16 %v836, %v836
      %v854 = vpack.c.b16 %v837, %v837
      %v855 = vpack.c.b16 %v838, %v838
      %v856 = vpack.c.b16 %v839, %v839
      %vm874 = vcmask 257024
      %875 = vst.msk [vmem:[%s259] sm:$0xf] %vm874, %v840
      %876 = vst.msk [vmem:[%s259 + $0x4] sm:$0xf] %vm874, %v841
      %877 = vst.msk [vmem:[%s259 + $0x8] sm:$0xf] %vm874, %v842
      %878 = vst.msk [vmem:[%s259 + $0xc] sm:$0xf] %vm874, %v843
      %879 = vst.msk [vmem:[%s259 + $0x10] sm:$0xf] %vm874, %v844
      %880 = vst.msk [vmem:[%s259 + $0x14] sm:$0xf] %vm874, %v845
      %881 = vst.msk [vmem:[%s259 + $0x18] sm:$0xf] %vm874, %v846
      %882 = vst.msk [vmem:[%s259 + $0x1c] sm:$0xf] %vm874, %v847
      %883 = vst.msk [vmem:[%s259 + $0x20] sm:$0xf] %vm874, %v848
      %884 = vst.msk [vmem:[%s259 + $0x24] sm:$0xf] %vm874, %v849
      %885 = vst.msk [vmem:[%s259 + $0x28] sm:$0xf] %vm874, %v850
      %886 = vst.msk [vmem:[%s259 + $0x2c] sm:$0xf] %vm874, %v851
      %887 = vst.msk [vmem:[%s259 + $0x30] sm:$0xf] %vm874, %v852
      %888 = vst.msk [vmem:[%s259 + $0x34] sm:$0xf] %vm874, %v853
      %889 = vst.msk [vmem:[%s259 + $0x38] sm:$0xf] %vm874, %v854
      %890 = vst.msk [vmem:[%s259 + $0x3c] sm:$0xf] %vm874, %v855
      %891 = vst.msk [vmem:[%s259 + $0x40] sm:$0xf] %vm874, %v856
      %v893 = vsel %vm603, %v305, 0
      %v896 = vsel %vm603, %v307, 0
      %v899 = vsel %vm603, %v309, 0
      %901 = vmatprep.subr.mxu0 0.0
      %902 = vmatpush1.msra.mxu0 %v797
      %903 = vmatprep.subr.mxu0 0.0
      %904 = vmatpush1.msra.mxu0 %v792
      %905 = vmatprep.subr.mxu0 0.0
      %906 = vmatpush1.msra.mxu0 %v787
      %907 = vmatprep.subr.mxu0 0.0
      %908 = vmatpush1.msra.mxu0 %v782
      %909 = vmatprep.subr.mxu0 0.0
      %910 = vmatpush1.msra.mxu0 %v777
      %911 = vmatprep.subr.mxu0 0.0
      %912 = vmatpush1.msra.mxu0 %v772
      %913 = vmatprep.subr.mxu0 0.0
      %914 = vmatpush1.msra.mxu0 %v767
      %915 = vmatprep.subr.mxu0 0.0
      %916 = vmatpush1.msra.mxu0 %v762
      %917 = vmatprep.subr.mxu0 0.0
      %918 = vmatpush1.msra.mxu0 %v757
      %919 = vmatprep.subr.mxu0 0.0
      %920 = vmatpush1.msra.mxu0 %v752
      %921 = vmatprep.subr.mxu0 0.0
      %922 = vmatpush1.msra.mxu0 %v747
      %923 = vmatprep.subr.mxu0 0.0
      %924 = vmatpush1.msra.mxu0 %v742
      %925 = vmatprep.subr.mxu0 0.0
      %926 = vmatpush1.msra.mxu0 %v737
      %927 = vmatprep.subr.mxu0 0.0
      %928 = vmatpush1.msra.mxu0 %v732
      %929 = vmatprep.subr.mxu0 0.0
      %930 = vmatpush1.msra.mxu0 %v727
      %931 = vmatprep.subr.mxu0 0.0
      %932 = vmatpush1.msra.mxu0 %v722
      %933 = vmatprep.subr.mxu0 0.0
      %934 = vmatpush2.msra.mxu0 0.0
      %935 = vmatprep.subr.mxu0 0.0
      %936 = vmatpush2.msra.mxu0 0.0
      %937 = vmatprep.subr.mxu0 0.0
      %938 = vmatpush2.msra.mxu0 0.0
      %939 = vmatprep.subr.mxu0 0.0
      %940 = vmatpush2.msra.mxu0 0.0
      %941 = vmatprep.subr.mxu0 0.0
      %942 = vmatpush2.msra.mxu0 0.0
      %943 = vmatprep.subr.mxu0 0.0
      %944 = vmatpush2.msra.mxu0 0.0
      %945 = vmatprep.subr.mxu0 0.0
      %946 = vmatpush2.msra.mxu0 0.0
      %947 = vmatprep.subr.mxu0 0.0
      %948 = vmatpush2.msra.mxu0 0.0
      %949 = vmatprep.subr.mxu0 0.0
      %950 = vmatpush2.msra.mxu0 0.0
      %951 = vmatprep.subr.mxu0 0.0
      %952 = vmatpush2.msra.mxu0 0.0
      %953 = vmatprep.subr.mxu0 0.0
      %954 = vmatpush2.msra.mxu0 0.0
      %955 = vmatprep.subr.mxu0 0.0
      %956 = vmatpush2.msra.mxu0 0.0
      %957 = vmatprep.subr.mxu0 0.0
      %958 = vmatpush2.msra.mxu0 0.0
      %959 = vmatprep.subr.mxu0 0.0
      %960 = vmatpush2.msra.mxu0 0.0
      %961 = vmatprep.subr.mxu0 0.0
      %962 = vmatpush2.msra.mxu0 0.0
      %963 = vmatprep.subr.mxu0 0.0
      %964 = vmatpush2.msra.mxu0 %v802
      %965 = vmatprep.mubr.f32.mxu0 %v893
      %966 = vmatmul.mubr.f32.gmra.mxu0 %v304
      %v967 = vpop.f32.mrf.mxu0
      %v968 = vadd.f32 0.0, %v967
      %v969 = vpop.f32.mrf.mxu0
      %970 = vmatprep.mubr.f32.mxu0 %v896
      %971 = vmatmul.mubr.f32.gmra.mxu0 %v306
      %v972 = vpop.f32.mrf.mxu0
      %v973 = vadd.f32 0.0, %v972
      %v974 = vpop.f32.mrf.mxu0
      %975 = vmatprep.mubr.f32.mxu0 %v899
      %976 = vmatmul.mubr.f32.gmra.mxu0 %v308
      %v977 = vpop.f32.mrf.mxu0
      %v978 = vadd.f32 0.0, %v977
      %v979 = vpop.f32.mrf.mxu0
      %980 = vdwg.mxu0
      %v981 = vmul.f32 %v722, %v722
      %v982 = vmul.f32 %v727, %v727
      %v983 = vmul.f32 %v732, %v732
      %v984 = vmul.f32 %v737, %v737
      %v985 = vmul.f32 %v742, %v742
      %v986 = vmul.f32 %v747, %v747
      %v987 = vmul.f32 %v752, %v752
      %v988 = vmul.f32 %v757, %v757
      %v989 = vmul.f32 %v762, %v762
      %v990 = vmul.f32 %v767, %v767
      %v991 = vmul.f32 %v772, %v772
      %v992 = vmul.f32 %v777, %v777
      %v993 = vmul.f32 %v782, %v782
      %v994 = vmul.f32 %v787, %v787
      %v995 = vmul.f32 %v792, %v792
      %v996 = vmul.f32 %v797, %v797
      %v997 = vmul.f32 %v802, %v802
      %998 = vmatprep.subr.mxu0 0.0
      %999 = vmatpush1.msra.mxu0 %v996
      %1000 = vmatprep.subr.mxu0 0.0
      %1001 = vmatpush1.msra.mxu0 %v995
      %1002 = vmatprep.subr.mxu0 0.0
      %1003 = vmatpush1.msra.mxu0 %v994
      %1004 = vmatprep.subr.mxu0 0.0
      %1005 = vmatpush1.msra.mxu0 %v993
      %1006 = vmatprep.subr.mxu0 0.0
      %1007 = vmatpush1.msra.mxu0 %v992
      %1008 = vmatprep.subr.mxu0 0.0
      %1009 = vmatpush1.msra.mxu0 %v991
      %1010 = vmatprep.subr.mxu0 0.0
      %1011 = vmatpush1.msra.mxu0 %v990
      %1012 = vmatprep.subr.mxu0 0.0
      %1013 = vmatpush1.msra.mxu0 %v989
      %1014 = vmatprep.subr.mxu0 0.0
      %1015 = vmatpush1.msra.mxu0 %v988
      %1016 = vmatprep.subr.mxu0 0.0
      %1017 = vmatpush1.msra.mxu0 %v987
      %1018 = vmatprep.subr.mxu0 0.0
      %1019 = vmatpush1.msra.mxu0 %v986
      %1020 = vmatprep.subr.mxu0 0.0
      %1021 = vmatpush1.msra.mxu0 %v985
      %1022 = vmatprep.subr.mxu0 0.0
      %1023 = vmatpush1.msra.mxu0 %v984
      %1024 = vmatprep.subr.mxu0 0.0
      %1025 = vmatpush1.msra.mxu0 %v983
      %1026 = vmatprep.subr.mxu0 0.0
      %1027 = vmatpush1.msra.mxu0 %v982
      %1028 = vmatprep.subr.mxu0 0.0
      %1029 = vmatpush1.msra.mxu0 %v981
      %1030 = vmatprep.subr.mxu0 0.0
      %1031 = vmatpush2.msra.mxu0 0.0
      %1032 = vmatprep.subr.mxu0 0.0
      %1033 = vmatpush2.msra.mxu0 0.0
      %1034 = vmatprep.subr.mxu0 0.0
      %1035 = vmatpush2.msra.mxu0 0.0
      %1036 = vmatprep.subr.mxu0 0.0
      %1037 = vmatpush2.msra.mxu0 0.0
      %1038 = vmatprep.subr.mxu0 0.0
      %1039 = vmatpush2.msra.mxu0 0.0
      %1040 = vmatprep.subr.mxu0 0.0
      %1041 = vmatpush2.msra.mxu0 0.0
      %1042 = vmatprep.subr.mxu0 0.0
      %1043 = vmatpush2.msra.mxu0 0.0
      %1044 = vmatprep.subr.mxu0 0.0
      %1045 = vmatpush2.msra.mxu0 0.0
      %1046 = vmatprep.subr.mxu0 0.0
      %1047 = vmatpush2.msra.mxu0 0.0
      %1048 = vmatprep.subr.mxu0 0.0
      %1049 = vmatpush2.msra.mxu0 0.0
      %1050 = vmatprep.subr.mxu0 0.0
      %1051 = vmatpush2.msra.mxu0 0.0
      %1052 = vmatprep.subr.mxu0 0.0
      %1053 = vmatpush2.msra.mxu0 0.0
      %1054 = vmatprep.subr.mxu0 0.0
      %1055 = vmatpush2.msra.mxu0 0.0
      %1056 = vmatprep.subr.mxu0 0.0
      %1057 = vmatpush2.msra.mxu0 0.0
      %1058 = vmatprep.subr.mxu0 0.0
      %1059 = vmatpush2.msra.mxu0 0.0
      %1060 = vmatprep.subr.mxu0 0.0
      %1061 = vmatpush2.msra.mxu0 %v997
      %1062 = vmatprep.mubr.f32.mxu0 %v893
      %1063 = vmatmul.mubr.f32.gmra.mxu0 %v304
      %v1064 = vpop.f32.mrf.mxu0
      %v1065 = vadd.f32 0.0, %v1064
      %v1066 = vpop.f32.mrf.mxu0
      %1067 = vmatprep.mubr.f32.mxu0 %v896
      %1068 = vmatmul.mubr.f32.gmra.mxu0 %v306
      %v1069 = vpop.f32.mrf.mxu0
      %v1070 = vadd.f32 0.0, %v1069
      %v1071 = vpop.f32.mrf.mxu0
      %1072 = vmatprep.mubr.f32.mxu0 %v899
      %1073 = vmatmul.mubr.f32.gmra.mxu0 %v308
      %v1074 = vpop.f32.mrf.mxu0
      %v1075 = vadd.f32 0.0, %v1074
      %v1076 = vpop.f32.mrf.mxu0
      %1077 = vdwg.mxu0
      %v1078 = vsel %vm333, %v968, 0.0
      %1079 = vadd.xlane.f32.xlu0 %v1078
      %v1080 = vpop.xlane.xlu0 %1079
      %v1081 = vsel %vm333, %v973, 0.0
      %1082 = vadd.xlane.f32.xlu0 %v1081
      %v1083 = vpop.xlane.xlu0 %1082
      %vm1084 = vcmask 253952
      %v1085 = vsel %vm1084, %v978, 0.0
      %1086 = vadd.xlane.f32.xlu0 %v1085
      %v1087 = vpop.xlane.xlu0 %1086
      %v1088 = vsel %vm333, %v1065, 0.0
      %1089 = vadd.xlane.f32.xlu0 %v1088
      %v1090 = vpop.xlane.xlu0 %1089
      %v1091 = vsel %vm333, %v1070, 0.0
      %1092 = vadd.xlane.f32.xlu0 %v1091
      %v1093 = vpop.xlane.xlu0 %1092
      %v1094 = vsel %vm1084, %v1075, 0.0
      %1095 = vadd.xlane.f32.xlu0 %v1094
      %v1096 = vpop.xlane.xlu0 %1095
      %vm1097 = vcmask 7168
      %v1098 = vsel %vm1097, %v1080, %v1090
      %v1099 = vsel %vm1097, %v1083, %v1093
      %v1100 = vsel %vm1097, %v1087, %v1096
      %vm1101 = vcmask 15360
      %1102 = vst.msk [vmem:[%s264] sm:$0xff] %vm1101, %v1098
      %1103 = vst.msk [vmem:[%s264 + $0x8] sm:$0xff] %vm1101, %v1099
      %vm1104 = vcmask 8192
      %1105 = vst.msk [vmem:[%s264 + $0x10] sm:$0x1] %vm1104, %v1100
      %p1106 = scmp.lt.s32.totalorder %s18, 1
      %s1107 = scalar_select %p1106, %s18, 1
      %s1108 = smul.addr %s1107, 17
      %s1109 = smul.addr %s1108, 4
      %s1110 = scalar_lea.vmem %s5, %s1109
      %p1111 = scmp.lt.s32.totalorder %s18, 1
      %s1112 = scalar_select %p1111, %s18, 1
      %s1113 = smul.addr %s1112, 3
      %s1114 = smul.addr %s1113, 8
      %s1115 = scalar_lea.vmem %s6, %s1114
      // Predicated region
      $region41: #{gcn_forward_pallas.2} parent=39 // pred_check
        %p1116 = pneg %p146
      $region42: #{gcn_forward_pallas.2} parent=39 // pred_check_branch
        %1118 = sbr.rel (%p1116) target = $region44
      $region43: #{gcn_forward_pallas.2} parent=39 // pred_region
        _
      $region44: #{gcn_forward_pallas.2} parent=39 // pred_fallthru
        _
      // Predicated region
      $region45: #{gcn_forward_pallas.2} parent=39 // pred_check
        %p1119 = pneg %p172
      $region46: #{gcn_forward_pallas.2} parent=39 // pred_check_branch
        %1121 = sbr.rel (%p1119) target = $region48
      $region47: #{gcn_forward_pallas.2} parent=39 // pred_region
        _
      $region48: #{gcn_forward_pallas.2} parent=39 // pred_fallthru
        _
    $region40: #{gcn_forward_pallas.2} parent=5 // pred_fallthru
      _
    %p1122 = scmp.le.s32.totalorder 2, %s13
    // Predicated region
    $region49: #{gcn_forward_pallas.2} parent=5 // pred_check
      %p1123 = pneg %p1122
    $region50: #{gcn_forward_pallas.2} parent=5 // pred_check_branch
      %1125 = sbr.rel (%p1123) target = $region52
    $region51: #{gcn_forward_pallas.2} parent=5 // pred_region
      %s1126 = ssub.s32 %s13, 2
      // Predicated region
      $region53: #{gcn_forward_pallas.2} parent=51 // pred_check
        %p1127 = pneg %p152
      $region54: #{gcn_forward_pallas.2} parent=51 // pred_check_branch
        %1129 = sbr.rel (%p1127) target = $region56
      $region55: #{gcn_forward_pallas.2} parent=51 // pred_region
        %p1130 = scmp.lt.s32.totalorder %s19, 1
        %s1131 = scalar_select %p1130, %s19, 1
        %s1132 = smul.addr %s1131, 17
        %s1133 = smul.addr %s1132, 4
        %s1134 = scalar_lea.vmem %s5, %s1133
      $region56: #{gcn_forward_pallas.2} parent=51 // pred_fallthru
        _
      // Predicated region
      $region57: #{gcn_forward_pallas.2} parent=51 // pred_check
        %p1135 = pneg %p178
      $region58: #{gcn_forward_pallas.2} parent=51 // pred_check_branch
        %1137 = sbr.rel (%p1135) target = $region60
      $region59: #{gcn_forward_pallas.2} parent=51 // pred_region
        %p1138 = scmp.lt.s32.totalorder %s19, 1
        %s1139 = scalar_select %p1138, %s19, 1
        %s1140 = smul.addr %s1139, 3
        %s1141 = smul.addr %s1140, 8
        %s1142 = scalar_lea.vmem %s6, %s1141
      $region60: #{gcn_forward_pallas.2} parent=51 // pred_fallthru
        _
    $region52: #{gcn_forward_pallas.2} parent=5 // pred_fallthru
      _
  $region6: #{gcn_forward_pallas.2} parent=0 // loop_footer
    %s17 = sadd.s32 1, %s13
  $region7: #{gcn_forward_pallas.2} parent=0 // loop_footer_branch
    %12 = sbr.rel target = $region3
  $region8: #{gcn_forward_pallas.2} parent=0 // loop_exit
    _

</llo_original>
